<compile_context>
chip_gen: v5e
topology: v5e:2x2
jax: 0.10.0
libtpu: 0.0.40
codegen_flags: <defaults>
</compile_context>

<pallas_src>
import jax
import jax.numpy as jnp
from jax.experimental import pallas as pl
from jax.experimental.pallas import tpu as pltpu

NUM_ATOM_TYPE = 119
NUM_CHIRALITY_TAG = 3
NUM_BOND_TYPE = 5          # type 4 is reserved for self-loop edges
NUM_BOND_DIRECTION = 3
BN_EPS = 1e-5


# ---------------------------------------------------------------------------
# Single fused kernel: L x (GCNConv + BatchNorm + ReLU) + mean pool +
# feat_lin + pred_head MLP.  No grid; everything resident in VMEM.
# ---------------------------------------------------------------------------
def gcn_fused_kernel(a_hat_ref, h0_ref, eagg_ref, w_ref, bnp_ref,
                     pool_ref, wf_ref, bf_ref, w1_ref, b1_ref,
                     w2_ref, b2_ref, hfeat_ref, out_ref):
    num_layer = w_ref.shape[0]
    a_hat = a_hat_ref[...]                       # bf16 [N, N] normalized adjacency
    h = h0_ref[...]                              # bf16 [N, D]

    # Statically unrolled layer loop (L small & static): all weights are
    # VMEM-resident, all ref indices are static.
    for l in range(num_layer):
        # GCNConv: m = A_hat @ (h @ W) + Eagg  (bias pre-folded into Eagg)
        xw = jnp.dot(h, w_ref[l], preferred_element_type=jnp.float32)
        m = jnp.dot(a_hat, xw.astype(jnp.bfloat16),
                    preferred_element_type=jnp.float32)
        m = m + eagg_ref[l].astype(jnp.float32)

        # BatchNorm1d (training-mode batch stats, biased var), fused to a
        # single scale/shift pass.  One-pass variance, all f32.
        mean = jnp.mean(m, axis=0, keepdims=True)
        msq = jnp.mean(m * m, axis=0, keepdims=True)
        var = jnp.maximum(msq - mean * mean, 0.0)
        s = bnp_ref[l][0:1, :] * jax.lax.rsqrt(var + BN_EPS)   # gamma * rsqrt
        t = bnp_ref[l][1:2, :] - mean * s                       # beta - mean*s
        hn = m * s + t

        # dropout(p=0) is identity; ReLU on all layers except the last.
        # Carry h in bf16 (next layer's matmul operand).
        h = (hn if l == num_layer - 1 else jnp.maximum(hn, 0.0)).astype(jnp.bfloat16)

    # --- fused head: global_mean_pool (dense matmul) + feat_lin + pred MLP ---
    pooled = jnp.dot(pool_ref[...], h, preferred_element_type=jnp.float32)
    hfeat = jnp.dot(pooled.astype(jnp.bfloat16), wf_ref[...],
                    preferred_element_type=jnp.float32) + bf_ref[...]
    z = jnp.maximum(
        jnp.dot(hfeat.astype(jnp.bfloat16), w1_ref[...],
                preferred_element_type=jnp.float32) + b1_ref[...], 0.0)
    out = jnp.dot(z.astype(jnp.bfloat16), w2_ref[...],
                  preferred_element_type=jnp.float32) + b2_ref[...]

    hfeat_ref[...] = hfeat
    out_ref[...] = out


def run_gcn_fused(a_hat, h0, eagg, w, bnp, pool_mat, wf, bf, w1, b1, w2, b2):
    Gp = pool_mat.shape[0]          # padded graph dim (multiple of 8)
    F = wf.shape[1]
    Fh = w2.shape[1]

    ins = (a_hat, h0, eagg, w, bnp, pool_mat, wf, bf, w1, b1, w2, b2)
    vmem = pltpu.MemorySpace.VMEM
    return pl.pallas_call(
        gcn_fused_kernel,
        out_shape=(jax.ShapeDtypeStruct((Gp, F), jnp.float32),
                   jax.ShapeDtypeStruct((Gp, Fh), jnp.float32)),
        in_specs=[pl.BlockSpec(memory_space=vmem) for _ in ins],
        out_specs=(pl.BlockSpec(memory_space=vmem),
                   pl.BlockSpec(memory_space=vmem)),
        compiler_params=pltpu.CompilerParams(
            vmem_limit_bytes=32 * 1024 * 1024),
    )(*ins)


# ---------------------------------------------------------------------------
# Parameter init (deterministic, synthetic weights)
# ---------------------------------------------------------------------------
def xavier_uniform(key, shape):
    bound = (6.0 / (shape[0] + shape[1])) ** 0.5
    return jax.random.uniform(key, shape, jnp.float32, -bound, bound)


def init_params(key, emb_dim, feat_dim, num_layer):
    keys = jax.random.split(key, 3 + num_layer)
    p = {
        "x_emb1": xavier_uniform(keys[0], (NUM_ATOM_TYPE, emb_dim)),
        "x_emb2": xavier_uniform(keys[1], (NUM_CHIRALITY_TAG, emb_dim)),
        "layers": [],
    }
    for l in range(num_layer):
        lk = jax.random.split(keys[2 + l], 3)
        p["layers"].append(dict(
            w=xavier_uniform(lk[0], (emb_dim, emb_dim)),
            b=jnp.zeros((emb_dim,), jnp.float32),
            edge_emb1=xavier_uniform(lk[1], (NUM_BOND_TYPE, emb_dim)),
            edge_emb2=xavier_uniform(lk[2], (NUM_BOND_DIRECTION, emb_dim)),
            gamma=jnp.ones((emb_dim,), jnp.float32),
            beta=jnp.zeros((emb_dim,), jnp.float32),
        ))
    kf, k1, k2 = jax.random.split(keys[2 + num_layer], 3)
    p["feat_w"] = xavier_uniform(kf, (emb_dim, feat_dim))
    p["feat_b"] = jnp.zeros((feat_dim,), jnp.float32)
    p["p1_w"] = xavier_uniform(k1, (feat_dim, feat_dim))
    p["p1_b"] = jnp.zeros((feat_dim,), jnp.float32)
    p["p2_w"] = xavier_uniform(k2, (feat_dim, feat_dim // 2))
    p["p2_b"] = jnp.zeros((feat_dim // 2,), jnp.float32)
    return p


# ---------------------------------------------------------------------------
# Forward pass (index glue in JAX, hot path in one Pallas kernel)
# ---------------------------------------------------------------------------
def gcn_forward(params, x, edge_index, edge_attr, batch, num_graphs):
    N = x.shape[0]
    D = params["x_emb1"].shape[1]

    # node embeddings (gather is glue); shipped bf16
    h0 = (params["x_emb1"][x[:, 0]] + params["x_emb2"][x[:, 1]]).astype(jnp.bfloat16)

    # add self loops (bond type 4, direction 0)
    loop = jnp.arange(N, dtype=edge_index.dtype)
    ei = jnp.concatenate([edge_index, jnp.stack([loop, loop])], axis=1)
    self_attr = jnp.concatenate(
        [jnp.full((N, 1), 4, dtype=edge_attr.dtype),
         jnp.zeros((N, 1), dtype=edge_attr.dtype)], axis=1)
    ea = jnp.concatenate([edge_attr, self_attr], axis=0)

    row, col = ei[0], ei[1]          # row = source (j), col = target (i)
    deg = jnp.zeros((N,), jnp.float32).at[row].add(1.0)
    dinv = jnp.where(deg > 0, jax.lax.rsqrt(deg), 0.0)
    norm = dinv[row] * dinv[col]

    # dense normalized adjacency: aggregate at target, read from source.
    a_hat_f32 = jnp.zeros((N, N), jnp.float32).at[col, row].add(norm)
    rowsum = a_hat_f32.sum(axis=1)          # for folding the GCNConv bias
    a_hat = a_hat_f32.astype(jnp.bfloat16)

    # Per-layer aggregated normalized edge embeddings (scatter is glue), with
    # the GCNConv bias folded in: Eagg_l += rowsum(A_hat) (x) b_l.  Shipped bf16.
    # BN params packed into one sublane-padded [L, 8, D]: row 0 = gamma, 1 = beta.
    eaggs, ws, bnps = [], [], []
    for lp in params["layers"]:
        eemb = lp["edge_emb1"][ea[:, 0]] + lp["edge_emb2"][ea[:, 1]]
        eagg_l = jnp.zeros((N, D), jnp.float32).at[col].add(norm[:, None] * eemb)
        eagg_l = eagg_l + rowsum[:, None] * lp["b"][None, :]
        eaggs.append(eagg_l.astype(jnp.bfloat16))
        ws.append(lp["w"].astype(jnp.bfloat16))
        bnps.append(jnp.concatenate(
            [lp["gamma"][None, :], lp["beta"][None, :],
             jnp.zeros((6, D), jnp.float32)], axis=0))
    eagg = jnp.stack(eaggs)
    w = jnp.stack(ws)
    bnp = jnp.stack(bnps)

    # global_mean_pool as a dense pooling matrix, padded to >=8 graphs so the
    # head matmuls / stores are sublane-full.  Padded rows are all-zero.
    g_pad = max(8, ((num_graphs + 7) // 8) * 8)
    onehot = (batch[None, :] == jnp.arange(g_pad)[:, None]).astype(jnp.float32)
    counts = jnp.maximum(onehot.sum(axis=1, keepdims=True), 1.0)
    pool_mat = (onehot / counts).astype(jnp.bfloat16)

    h_feat, out = run_gcn_fused(
        a_hat, h0, eagg, w, bnp, pool_mat,
        params["feat_w"].astype(jnp.bfloat16), params["feat_b"][None, :],
        params["p1_w"].astype(jnp.bfloat16), params["p1_b"][None, :],
        params["p2_w"].astype(jnp.bfloat16), params["p2_b"][None, :])
    return h_feat[:num_graphs], out[:num_graphs]


if __name__ == "__main__":
    # Small but MXU-friendly shapes: 128 nodes, 2 graphs of 64 nodes,
    # 256 edges, emb_dim=128, feat_dim=256, num_layer=5.
    N, D, F, L, G, E = 128, 128, 256, 5, 2, 256

    key = jax.random.PRNGKey(0)
    kp, k1, k2, k3, k4, k5, k6 = jax.random.split(key, 7)

    params = init_params(kp, D, F, L)

    x = jnp.stack(
        [jax.random.randint(k1, (N,), 0, NUM_ATOM_TYPE),
         jax.random.randint(k2, (N,), 0, NUM_CHIRALITY_TAG)],
        axis=1).astype(jnp.int32)

    # nodes 0..63 -> graph 0, nodes 64..127 -> graph 1; edges stay within graphs
    npg = N // G
    batch = jnp.concatenate(
        [jnp.zeros((npg,), jnp.int32), jnp.ones((npg,), jnp.int32)])
    src = jax.random.randint(k3, (E,), 0, npg)
    dst = jax.random.randint(k4, (E,), 0, npg)
    offs = (jnp.arange(E) % G) * npg
    edge_index = jnp.stack([src + offs, dst + offs]).astype(jnp.int32)
    edge_attr = jnp.stack(
        [jax.random.randint(k5, (E,), 0, 4),
         jax.random.randint(k6, (E,), 0, NUM_BOND_DIRECTION)],
        axis=1).astype(jnp.int32)

    h_feat, out = gcn_forward(params, x, edge_index, edge_attr, batch, G)
    jax.block_until_ready((h_feat, out))

    assert h_feat.shape == (G, F) and out.shape == (G, F // 2)
    # TODO(synk): dropout is identity (drop_ratio=0 default); BatchNorm uses
    # training-mode batch statistics (PyTorch module default .train()).
    print("KERNEL_OK")
</pallas_src>

<mosaic_0001>
module attributes {stable_mosaic.version = 11 : i64} {
  func.func @gcn_fused_kernel(%arg0: memref<128x128xbf16, #tpu.memory_space<vmem>>, %arg1: memref<128x128xbf16, #tpu.memory_space<vmem>>, %arg2: memref<5x128x128xbf16, #tpu.memory_space<vmem>>, %arg3: memref<5x128x128xbf16, #tpu.memory_space<vmem>>, %arg4: memref<5x8x128xf32, #tpu.memory_space<vmem>>, %arg5: memref<8x128xbf16, #tpu.memory_space<vmem>>, %arg6: memref<128x256xbf16, #tpu.memory_space<vmem>>, %arg7: memref<1x256xf32, #tpu.memory_space<vmem>>, %arg8: memref<256x256xbf16, #tpu.memory_space<vmem>>, %arg9: memref<1x256xf32, #tpu.memory_space<vmem>>, %arg10: memref<256x128xbf16, #tpu.memory_space<vmem>>, %arg11: memref<1x128xf32, #tpu.memory_space<vmem>>, %arg12: memref<8x256xf32, #tpu.memory_space<vmem>>, %arg13: memref<8x128xf32, #tpu.memory_space<vmem>>) attributes {dimension_semantics = [], scalar_prefetch = 0 : i64, scratch_operands = 0 : i64, tpu.core_type = #tpu.core_type<tc>} {
    %c0 = arith.constant 0 : index
    %c0_0 = arith.constant 0 : index
    %0 = vector.load %arg0[%c0, %c0_0] : memref<128x128xbf16, #tpu.memory_space<vmem>>, vector<128x128xbf16>
    %c0_1 = arith.constant 0 : index
    %c0_2 = arith.constant 0 : index
    %1 = vector.load %arg1[%c0_1, %c0_2] : memref<128x128xbf16, #tpu.memory_space<vmem>>, vector<128x128xbf16>
    %c0_3 = arith.constant 0 : index
    %c0_4 = arith.constant 0 : index
    %c0_5 = arith.constant 0 : index
    %2 = vector.load %arg3[%c0_3, %c0_4, %c0_5] : memref<5x128x128xbf16, #tpu.memory_space<vmem>>, vector<1x128x128xbf16>
    %3 = vector.shape_cast %2 : vector<1x128x128xbf16> to vector<128x128xbf16>
    %cst = arith.constant dense<0.000000e+00> : vector<128x128xf32>
    %4 = tpu.matmul %1, %3, %cst {dimension_numbers = #tpu.dot_dimension_numbers<[1], [0], [0], [1], [0, 0, 1, 1], [], []>} : vector<128x128xbf16>, vector<128x128xbf16>, vector<128x128xf32> -> vector<128x128xf32>
    %5 = arith.truncf %4 : vector<128x128xf32> to vector<128x128xbf16>
    %cst_6 = arith.constant dense<0.000000e+00> : vector<128x128xf32>
    %6 = tpu.matmul %0, %5, %cst_6 {dimension_numbers = #tpu.dot_dimension_numbers<[1], [0], [0], [1], [0, 0, 1, 1], [], []>} : vector<128x128xbf16>, vector<128x128xbf16>, vector<128x128xf32> -> vector<128x128xf32>
    %c0_7 = arith.constant 0 : index
    %c0_8 = arith.constant 0 : index
    %c0_9 = arith.constant 0 : index
    %7 = vector.load %arg2[%c0_7, %c0_8, %c0_9] : memref<5x128x128xbf16, #tpu.memory_space<vmem>>, vector<1x128x128xbf16>
    %8 = vector.shape_cast %7 : vector<1x128x128xbf16> to vector<128x128xbf16>
    %9 = arith.extf %8 : vector<128x128xbf16> to vector<128x128xf32>
    %10 = arith.addf %6, %9 : vector<128x128xf32>
    %cst_10 = arith.constant dense<0.000000e+00> : vector<128xf32>
    %11 = vector.multi_reduction <add>, %10, %cst_10 [0] : vector<128x128xf32> to vector<128xf32>
    %12 = vector.shape_cast %11 : vector<128xf32> to vector<1x128xf32>
    %cst_11 = arith.constant 1.280000e+02 : f32
    %13 = vector.broadcast %cst_11 : f32 to vector<1x128xf32>
    %14 = arith.divf %12, %13 : vector<1x128xf32>
    %15 = arith.mulf %10, %10 : vector<128x128xf32>
    %cst_12 = arith.constant dense<0.000000e+00> : vector<128xf32>
    %16 = vector.multi_reduction <add>, %15, %cst_12 [0] : vector<128x128xf32> to vector<128xf32>
    %17 = vector.shape_cast %16 : vector<128xf32> to vector<1x128xf32>
    %cst_13 = arith.constant 1.280000e+02 : f32
    %18 = vector.broadcast %cst_13 : f32 to vector<1x128xf32>
    %19 = arith.divf %17, %18 : vector<1x128xf32>
    %20 = arith.mulf %14, %14 : vector<1x128xf32>
    %21 = arith.subf %19, %20 : vector<1x128xf32>
    %cst_14 = arith.constant 0.000000e+00 : f32
    %22 = vector.broadcast %cst_14 : f32 to vector<1x128xf32>
    %23 = arith.maximumf %21, %22 : vector<1x128xf32>
    %c0_15 = arith.constant 0 : index
    %c0_16 = arith.constant 0 : index
    %c0_17 = arith.constant 0 : index
    %24 = vector.load %arg4[%c0_15, %c0_16, %c0_17] : memref<5x8x128xf32, #tpu.memory_space<vmem>>, vector<1x8x128xf32>
    %25 = vector.shape_cast %24 : vector<1x8x128xf32> to vector<8x128xf32>
    %26 = vector.extract_strided_slice %25 {offsets = [0, 0], sizes = [1, 128], strides = [1, 1]} : vector<8x128xf32> to vector<1x128xf32>
    %cst_18 = arith.constant 9.99999974E-6 : f32
    %27 = vector.broadcast %cst_18 : f32 to vector<1x128xf32>
    %28 = arith.addf %23, %27 : vector<1x128xf32>
    %29 = math.rsqrt %28 : vector<1x128xf32>
    %30 = arith.mulf %26, %29 : vector<1x128xf32>
    %c0_19 = arith.constant 0 : index
    %c0_20 = arith.constant 0 : index
    %c0_21 = arith.constant 0 : index
    %31 = vector.load %arg4[%c0_19, %c0_20, %c0_21] : memref<5x8x128xf32, #tpu.memory_space<vmem>>, vector<1x8x128xf32>
    %32 = vector.shape_cast %31 : vector<1x8x128xf32> to vector<8x128xf32>
    %33 = vector.extract_strided_slice %32 {offsets = [1, 0], sizes = [1, 128], strides = [1, 1]} : vector<8x128xf32> to vector<1x128xf32>
    %34 = arith.mulf %14, %30 : vector<1x128xf32>
    %35 = arith.subf %33, %34 : vector<1x128xf32>
    %36 = vector.broadcast %30 : vector<1x128xf32> to vector<128x128xf32>
    %37 = arith.mulf %10, %36 : vector<128x128xf32>
    %38 = vector.broadcast %35 : vector<1x128xf32> to vector<128x128xf32>
    %39 = arith.addf %37, %38 : vector<128x128xf32>
    %cst_22 = arith.constant 0.000000e+00 : f32
    %40 = vector.broadcast %cst_22 : f32 to vector<128x128xf32>
    %41 = arith.maximumf %39, %40 : vector<128x128xf32>
    %42 = arith.truncf %41 : vector<128x128xf32> to vector<128x128xbf16>
    %c1 = arith.constant 1 : index
    %c0_23 = arith.constant 0 : index
    %c0_24 = arith.constant 0 : index
    %43 = vector.load %arg3[%c1, %c0_23, %c0_24] : memref<5x128x128xbf16, #tpu.memory_space<vmem>>, vector<1x128x128xbf16>
    %44 = vector.shape_cast %43 : vector<1x128x128xbf16> to vector<128x128xbf16>
    %cst_25 = arith.constant dense<0.000000e+00> : vector<128x128xf32>
    %45 = tpu.matmul %42, %44, %cst_25 {dimension_numbers = #tpu.dot_dimension_numbers<[1], [0], [0], [1], [0, 0, 1, 1], [], []>} : vector<128x128xbf16>, vector<128x128xbf16>, vector<128x128xf32> -> vector<128x128xf32>
    %46 = arith.truncf %45 : vector<128x128xf32> to vector<128x128xbf16>
    %cst_26 = arith.constant dense<0.000000e+00> : vector<128x128xf32>
    %47 = tpu.matmul %0, %46, %cst_26 {dimension_numbers = #tpu.dot_dimension_numbers<[1], [0], [0], [1], [0, 0, 1, 1], [], []>} : vector<128x128xbf16>, vector<128x128xbf16>, vector<128x128xf32> -> vector<128x128xf32>
    %c1_27 = arith.constant 1 : index
    %c0_28 = arith.constant 0 : index
    %c0_29 = arith.constant 0 : index
    %48 = vector.load %arg2[%c1_27, %c0_28, %c0_29] : memref<5x128x128xbf16, #tpu.memory_space<vmem>>, vector<1x128x128xbf16>
    %49 = vector.shape_cast %48 : vector<1x128x128xbf16> to vector<128x128xbf16>
    %50 = arith.extf %49 : vector<128x128xbf16> to vector<128x128xf32>
    %51 = arith.addf %47, %50 : vector<128x128xf32>
    %cst_30 = arith.constant dense<0.000000e+00> : vector<128xf32>
    %52 = vector.multi_reduction <add>, %51, %cst_30 [0] : vector<128x128xf32> to vector<128xf32>
    %53 = vector.shape_cast %52 : vector<128xf32> to vector<1x128xf32>
    %cst_31 = arith.constant 1.280000e+02 : f32
    %54 = vector.broadcast %cst_31 : f32 to vector<1x128xf32>
    %55 = arith.divf %53, %54 : vector<1x128xf32>
    %56 = arith.mulf %51, %51 : vector<128x128xf32>
    %cst_32 = arith.constant dense<0.000000e+00> : vector<128xf32>
    %57 = vector.multi_reduction <add>, %56, %cst_32 [0] : vector<128x128xf32> to vector<128xf32>
    %58 = vector.shape_cast %57 : vector<128xf32> to vector<1x128xf32>
    %cst_33 = arith.constant 1.280000e+02 : f32
    %59 = vector.broadcast %cst_33 : f32 to vector<1x128xf32>
    %60 = arith.divf %58, %59 : vector<1x128xf32>
    %61 = arith.mulf %55, %55 : vector<1x128xf32>
    %62 = arith.subf %60, %61 : vector<1x128xf32>
    %cst_34 = arith.constant 0.000000e+00 : f32
    %63 = vector.broadcast %cst_34 : f32 to vector<1x128xf32>
    %64 = arith.maximumf %62, %63 : vector<1x128xf32>
    %c1_35 = arith.constant 1 : index
    %c0_36 = arith.constant 0 : index
    %c0_37 = arith.constant 0 : index
    %65 = vector.load %arg4[%c1_35, %c0_36, %c0_37] : memref<5x8x128xf32, #tpu.memory_space<vmem>>, vector<1x8x128xf32>
    %66 = vector.shape_cast %65 : vector<1x8x128xf32> to vector<8x128xf32>
    %67 = vector.extract_strided_slice %66 {offsets = [0, 0], sizes = [1, 128], strides = [1, 1]} : vector<8x128xf32> to vector<1x128xf32>
    %cst_38 = arith.constant 9.99999974E-6 : f32
    %68 = vector.broadcast %cst_38 : f32 to vector<1x128xf32>
    %69 = arith.addf %64, %68 : vector<1x128xf32>
    %70 = math.rsqrt %69 : vector<1x128xf32>
    %71 = arith.mulf %67, %70 : vector<1x128xf32>
    %c1_39 = arith.constant 1 : index
    %c0_40 = arith.constant 0 : index
    %c0_41 = arith.constant 0 : index
    %72 = vector.load %arg4[%c1_39, %c0_40, %c0_41] : memref<5x8x128xf32, #tpu.memory_space<vmem>>, vector<1x8x128xf32>
    %73 = vector.shape_cast %72 : vector<1x8x128xf32> to vector<8x128xf32>
    %74 = vector.extract_strided_slice %73 {offsets = [1, 0], sizes = [1, 128], strides = [1, 1]} : vector<8x128xf32> to vector<1x128xf32>
    %75 = arith.mulf %55, %71 : vector<1x128xf32>
    %76 = arith.subf %74, %75 : vector<1x128xf32>
    %77 = vector.broadcast %71 : vector<1x128xf32> to vector<128x128xf32>
    %78 = arith.mulf %51, %77 : vector<128x128xf32>
    %79 = vector.broadcast %76 : vector<1x128xf32> to vector<128x128xf32>
    %80 = arith.addf %78, %79 : vector<128x128xf32>
    %cst_42 = arith.constant 0.000000e+00 : f32
    %81 = vector.broadcast %cst_42 : f32 to vector<128x128xf32>
    %82 = arith.maximumf %80, %81 : vector<128x128xf32>
    %83 = arith.truncf %82 : vector<128x128xf32> to vector<128x128xbf16>
    %c2 = arith.constant 2 : index
    %c0_43 = arith.constant 0 : index
    %c0_44 = arith.constant 0 : index
    %84 = vector.load %arg3[%c2, %c0_43, %c0_44] : memref<5x128x128xbf16, #tpu.memory_space<vmem>>, vector<1x128x128xbf16>
    %85 = vector.shape_cast %84 : vector<1x128x128xbf16> to vector<128x128xbf16>
    %cst_45 = arith.constant dense<0.000000e+00> : vector<128x128xf32>
    %86 = tpu.matmul %83, %85, %cst_45 {dimension_numbers = #tpu.dot_dimension_numbers<[1], [0], [0], [1], [0, 0, 1, 1], [], []>} : vector<128x128xbf16>, vector<128x128xbf16>, vector<128x128xf32> -> vector<128x128xf32>
    %87 = arith.truncf %86 : vector<128x128xf32> to vector<128x128xbf16>
    %cst_46 = arith.constant dense<0.000000e+00> : vector<128x128xf32>
    %88 = tpu.matmul %0, %87, %cst_46 {dimension_numbers = #tpu.dot_dimension_numbers<[1], [0], [0], [1], [0, 0, 1, 1], [], []>} : vector<128x128xbf16>, vector<128x128xbf16>, vector<128x128xf32> -> vector<128x128xf32>
    %c2_47 = arith.constant 2 : index
    %c0_48 = arith.constant 0 : index
    %c0_49 = arith.constant 0 : index
    %89 = vector.load %arg2[%c2_47, %c0_48, %c0_49] : memref<5x128x128xbf16, #tpu.memory_space<vmem>>, vector<1x128x128xbf16>
    %90 = vector.shape_cast %89 : vector<1x128x128xbf16> to vector<128x128xbf16>
    %91 = arith.extf %90 : vector<128x128xbf16> to vector<128x128xf32>
    %92 = arith.addf %88, %91 : vector<128x128xf32>
    %cst_50 = arith.constant dense<0.000000e+00> : vector<128xf32>
    %93 = vector.multi_reduction <add>, %92, %cst_50 [0] : vector<128x128xf32> to vector<128xf32>
    %94 = vector.shape_cast %93 : vector<128xf32> to vector<1x128xf32>
    %cst_51 = arith.constant 1.280000e+02 : f32
    %95 = vector.broadcast %cst_51 : f32 to vector<1x128xf32>
    %96 = arith.divf %94, %95 : vector<1x128xf32>
    %97 = arith.mulf %92, %92 : vector<128x128xf32>
    %cst_52 = arith.constant dense<0.000000e+00> : vector<128xf32>
    %98 = vector.multi_reduction <add>, %97, %cst_52 [0] : vector<128x128xf32> to vector<128xf32>
    %99 = vector.shape_cast %98 : vector<128xf32> to vector<1x128xf32>
    %cst_53 = arith.constant 1.280000e+02 : f32
    %100 = vector.broadcast %cst_53 : f32 to vector<1x128xf32>
    %101 = arith.divf %99, %100 : vector<1x128xf32>
    %102 = arith.mulf %96, %96 : vector<1x128xf32>
    %103 = arith.subf %101, %102 : vector<1x128xf32>
    %cst_54 = arith.constant 0.000000e+00 : f32
    %104 = vector.broadcast %cst_54 : f32 to vector<1x128xf32>
    %105 = arith.maximumf %103, %104 : vector<1x128xf32>
    %c2_55 = arith.constant 2 : index
    %c0_56 = arith.constant 0 : index
    %c0_57 = arith.constant 0 : index
    %106 = vector.load %arg4[%c2_55, %c0_56, %c0_57] : memref<5x8x128xf32, #tpu.memory_space<vmem>>, vector<1x8x128xf32>
    %107 = vector.shape_cast %106 : vector<1x8x128xf32> to vector<8x128xf32>
    %108 = vector.extract_strided_slice %107 {offsets = [0, 0], sizes = [1, 128], strides = [1, 1]} : vector<8x128xf32> to vector<1x128xf32>
    %cst_58 = arith.constant 9.99999974E-6 : f32
    %109 = vector.broadcast %cst_58 : f32 to vector<1x128xf32>
    %110 = arith.addf %105, %109 : vector<1x128xf32>
    %111 = math.rsqrt %110 : vector<1x128xf32>
    %112 = arith.mulf %108, %111 : vector<1x128xf32>
    %c2_59 = arith.constant 2 : index
    %c0_60 = arith.constant 0 : index
    %c0_61 = arith.constant 0 : index
    %113 = vector.load %arg4[%c2_59, %c0_60, %c0_61] : memref<5x8x128xf32, #tpu.memory_space<vmem>>, vector<1x8x128xf32>
    %114 = vector.shape_cast %113 : vector<1x8x128xf32> to vector<8x128xf32>
    %115 = vector.extract_strided_slice %114 {offsets = [1, 0], sizes = [1, 128], strides = [1, 1]} : vector<8x128xf32> to vector<1x128xf32>
    %116 = arith.mulf %96, %112 : vector<1x128xf32>
    %117 = arith.subf %115, %116 : vector<1x128xf32>
    %118 = vector.broadcast %112 : vector<1x128xf32> to vector<128x128xf32>
    %119 = arith.mulf %92, %118 : vector<128x128xf32>
    %120 = vector.broadcast %117 : vector<1x128xf32> to vector<128x128xf32>
    %121 = arith.addf %119, %120 : vector<128x128xf32>
    %cst_62 = arith.constant 0.000000e+00 : f32
    %122 = vector.broadcast %cst_62 : f32 to vector<128x128xf32>
    %123 = arith.maximumf %121, %122 : vector<128x128xf32>
    %124 = arith.truncf %123 : vector<128x128xf32> to vector<128x128xbf16>
    %c3 = arith.constant 3 : index
    %c0_63 = arith.constant 0 : index
    %c0_64 = arith.constant 0 : index
    %125 = vector.load %arg3[%c3, %c0_63, %c0_64] : memref<5x128x128xbf16, #tpu.memory_space<vmem>>, vector<1x128x128xbf16>
    %126 = vector.shape_cast %125 : vector<1x128x128xbf16> to vector<128x128xbf16>
    %cst_65 = arith.constant dense<0.000000e+00> : vector<128x128xf32>
    %127 = tpu.matmul %124, %126, %cst_65 {dimension_numbers = #tpu.dot_dimension_numbers<[1], [0], [0], [1], [0, 0, 1, 1], [], []>} : vector<128x128xbf16>, vector<128x128xbf16>, vector<128x128xf32> -> vector<128x128xf32>
    %128 = arith.truncf %127 : vector<128x128xf32> to vector<128x128xbf16>
    %cst_66 = arith.constant dense<0.000000e+00> : vector<128x128xf32>
    %129 = tpu.matmul %0, %128, %cst_66 {dimension_numbers = #tpu.dot_dimension_numbers<[1], [0], [0], [1], [0, 0, 1, 1], [], []>} : vector<128x128xbf16>, vector<128x128xbf16>, vector<128x128xf32> -> vector<128x128xf32>
    %c3_67 = arith.constant 3 : index
    %c0_68 = arith.constant 0 : index
    %c0_69 = arith.constant 0 : index
    %130 = vector.load %arg2[%c3_67, %c0_68, %c0_69] : memref<5x128x128xbf16, #tpu.memory_space<vmem>>, vector<1x128x128xbf16>
    %131 = vector.shape_cast %130 : vector<1x128x128xbf16> to vector<128x128xbf16>
    %132 = arith.extf %131 : vector<128x128xbf16> to vector<128x128xf32>
    %133 = arith.addf %129, %132 : vector<128x128xf32>
    %cst_70 = arith.constant dense<0.000000e+00> : vector<128xf32>
    %134 = vector.multi_reduction <add>, %133, %cst_70 [0] : vector<128x128xf32> to vector<128xf32>
    %135 = vector.shape_cast %134 : vector<128xf32> to vector<1x128xf32>
    %cst_71 = arith.constant 1.280000e+02 : f32
    %136 = vector.broadcast %cst_71 : f32 to vector<1x128xf32>
    %137 = arith.divf %135, %136 : vector<1x128xf32>
    %138 = arith.mulf %133, %133 : vector<128x128xf32>
    %cst_72 = arith.constant dense<0.000000e+00> : vector<128xf32>
    %139 = vector.multi_reduction <add>, %138, %cst_72 [0] : vector<128x128xf32> to vector<128xf32>
    %140 = vector.shape_cast %139 : vector<128xf32> to vector<1x128xf32>
    %cst_73 = arith.constant 1.280000e+02 : f32
    %141 = vector.broadcast %cst_73 : f32 to vector<1x128xf32>
    %142 = arith.divf %140, %141 : vector<1x128xf32>
    %143 = arith.mulf %137, %137 : vector<1x128xf32>
    %144 = arith.subf %142, %143 : vector<1x128xf32>
    %cst_74 = arith.constant 0.000000e+00 : f32
    %145 = vector.broadcast %cst_74 : f32 to vector<1x128xf32>
    %146 = arith.maximumf %144, %145 : vector<1x128xf32>
    %c3_75 = arith.constant 3 : index
    %c0_76 = arith.constant 0 : index
    %c0_77 = arith.constant 0 : index
    %147 = vector.load %arg4[%c3_75, %c0_76, %c0_77] : memref<5x8x128xf32, #tpu.memory_space<vmem>>, vector<1x8x128xf32>
    %148 = vector.shape_cast %147 : vector<1x8x128xf32> to vector<8x128xf32>
    %149 = vector.extract_strided_slice %148 {offsets = [0, 0], sizes = [1, 128], strides = [1, 1]} : vector<8x128xf32> to vector<1x128xf32>
    %cst_78 = arith.constant 9.99999974E-6 : f32
    %150 = vector.broadcast %cst_78 : f32 to vector<1x128xf32>
    %151 = arith.addf %146, %150 : vector<1x128xf32>
    %152 = math.rsqrt %151 : vector<1x128xf32>
    %153 = arith.mulf %149, %152 : vector<1x128xf32>
    %c3_79 = arith.constant 3 : index
    %c0_80 = arith.constant 0 : index
    %c0_81 = arith.constant 0 : index
    %154 = vector.load %arg4[%c3_79, %c0_80, %c0_81] : memref<5x8x128xf32, #tpu.memory_space<vmem>>, vector<1x8x128xf32>
    %155 = vector.shape_cast %154 : vector<1x8x128xf32> to vector<8x128xf32>
    %156 = vector.extract_strided_slice %155 {offsets = [1, 0], sizes = [1, 128], strides = [1, 1]} : vector<8x128xf32> to vector<1x128xf32>
    %157 = arith.mulf %137, %153 : vector<1x128xf32>
    %158 = arith.subf %156, %157 : vector<1x128xf32>
    %159 = vector.broadcast %153 : vector<1x128xf32> to vector<128x128xf32>
    %160 = arith.mulf %133, %159 : vector<128x128xf32>
    %161 = vector.broadcast %158 : vector<1x128xf32> to vector<128x128xf32>
    %162 = arith.addf %160, %161 : vector<128x128xf32>
    %cst_82 = arith.constant 0.000000e+00 : f32
    %163 = vector.broadcast %cst_82 : f32 to vector<128x128xf32>
    %164 = arith.maximumf %162, %163 : vector<128x128xf32>
    %165 = arith.truncf %164 : vector<128x128xf32> to vector<128x128xbf16>
    %c4 = arith.constant 4 : index
    %c0_83 = arith.constant 0 : index
    %c0_84 = arith.constant 0 : index
    %166 = vector.load %arg3[%c4, %c0_83, %c0_84] : memref<5x128x128xbf16, #tpu.memory_space<vmem>>, vector<1x128x128xbf16>
    %167 = vector.shape_cast %166 : vector<1x128x128xbf16> to vector<128x128xbf16>
    %cst_85 = arith.constant dense<0.000000e+00> : vector<128x128xf32>
    %168 = tpu.matmul %165, %167, %cst_85 {dimension_numbers = #tpu.dot_dimension_numbers<[1], [0], [0], [1], [0, 0, 1, 1], [], []>} : vector<128x128xbf16>, vector<128x128xbf16>, vector<128x128xf32> -> vector<128x128xf32>
    %169 = arith.truncf %168 : vector<128x128xf32> to vector<128x128xbf16>
    %cst_86 = arith.constant dense<0.000000e+00> : vector<128x128xf32>
    %170 = tpu.matmul %0, %169, %cst_86 {dimension_numbers = #tpu.dot_dimension_numbers<[1], [0], [0], [1], [0, 0, 1, 1], [], []>} : vector<128x128xbf16>, vector<128x128xbf16>, vector<128x128xf32> -> vector<128x128xf32>
    %c4_87 = arith.constant 4 : index
    %c0_88 = arith.constant 0 : index
    %c0_89 = arith.constant 0 : index
    %171 = vector.load %arg2[%c4_87, %c0_88, %c0_89] : memref<5x128x128xbf16, #tpu.memory_space<vmem>>, vector<1x128x128xbf16>
    %172 = vector.shape_cast %171 : vector<1x128x128xbf16> to vector<128x128xbf16>
    %173 = arith.extf %172 : vector<128x128xbf16> to vector<128x128xf32>
    %174 = arith.addf %170, %173 : vector<128x128xf32>
    %cst_90 = arith.constant dense<0.000000e+00> : vector<128xf32>
    %175 = vector.multi_reduction <add>, %174, %cst_90 [0] : vector<128x128xf32> to vector<128xf32>
    %176 = vector.shape_cast %175 : vector<128xf32> to vector<1x128xf32>
    %cst_91 = arith.constant 1.280000e+02 : f32
    %177 = vector.broadcast %cst_91 : f32 to vector<1x128xf32>
    %178 = arith.divf %176, %177 : vector<1x128xf32>
    %179 = arith.mulf %174, %174 : vector<128x128xf32>
    %cst_92 = arith.constant dense<0.000000e+00> : vector<128xf32>
    %180 = vector.multi_reduction <add>, %179, %cst_92 [0] : vector<128x128xf32> to vector<128xf32>
    %181 = vector.shape_cast %180 : vector<128xf32> to vector<1x128xf32>
    %cst_93 = arith.constant 1.280000e+02 : f32
    %182 = vector.broadcast %cst_93 : f32 to vector<1x128xf32>
    %183 = arith.divf %181, %182 : vector<1x128xf32>
    %184 = arith.mulf %178, %178 : vector<1x128xf32>
    %185 = arith.subf %183, %184 : vector<1x128xf32>
    %cst_94 = arith.constant 0.000000e+00 : f32
    %186 = vector.broadcast %cst_94 : f32 to vector<1x128xf32>
    %187 = arith.maximumf %185, %186 : vector<1x128xf32>
    %c4_95 = arith.constant 4 : index
    %c0_96 = arith.constant 0 : index
    %c0_97 = arith.constant 0 : index
    %188 = vector.load %arg4[%c4_95, %c0_96, %c0_97] : memref<5x8x128xf32, #tpu.memory_space<vmem>>, vector<1x8x128xf32>
    %189 = vector.shape_cast %188 : vector<1x8x128xf32> to vector<8x128xf32>
    %190 = vector.extract_strided_slice %189 {offsets = [0, 0], sizes = [1, 128], strides = [1, 1]} : vector<8x128xf32> to vector<1x128xf32>
    %cst_98 = arith.constant 9.99999974E-6 : f32
    %191 = vector.broadcast %cst_98 : f32 to vector<1x128xf32>
    %192 = arith.addf %187, %191 : vector<1x128xf32>
    %193 = math.rsqrt %192 : vector<1x128xf32>
    %194 = arith.mulf %190, %193 : vector<1x128xf32>
    %c4_99 = arith.constant 4 : index
    %c0_100 = arith.constant 0 : index
    %c0_101 = arith.constant 0 : index
    %195 = vector.load %arg4[%c4_99, %c0_100, %c0_101] : memref<5x8x128xf32, #tpu.memory_space<vmem>>, vector<1x8x128xf32>
    %196 = vector.shape_cast %195 : vector<1x8x128xf32> to vector<8x128xf32>
    %197 = vector.extract_strided_slice %196 {offsets = [1, 0], sizes = [1, 128], strides = [1, 1]} : vector<8x128xf32> to vector<1x128xf32>
    %198 = arith.mulf %178, %194 : vector<1x128xf32>
    %199 = arith.subf %197, %198 : vector<1x128xf32>
    %200 = vector.broadcast %194 : vector<1x128xf32> to vector<128x128xf32>
    %201 = arith.mulf %174, %200 : vector<128x128xf32>
    %202 = vector.broadcast %199 : vector<1x128xf32> to vector<128x128xf32>
    %203 = arith.addf %201, %202 : vector<128x128xf32>
    %204 = arith.truncf %203 : vector<128x128xf32> to vector<128x128xbf16>
    %c0_102 = arith.constant 0 : index
    %c0_103 = arith.constant 0 : index
    %205 = vector.load %arg5[%c0_102, %c0_103] : memref<8x128xbf16, #tpu.memory_space<vmem>>, vector<8x128xbf16>
    %cst_104 = arith.constant dense<0.000000e+00> : vector<8x128xf32>
    %206 = tpu.matmul %205, %204, %cst_104 {dimension_numbers = #tpu.dot_dimension_numbers<[1], [0], [0], [1], [0, 0, 1, 1], [], []>} : vector<8x128xbf16>, vector<128x128xbf16>, vector<8x128xf32> -> vector<8x128xf32>
    %207 = arith.truncf %206 : vector<8x128xf32> to vector<8x128xbf16>
    %c0_105 = arith.constant 0 : index
    %c0_106 = arith.constant 0 : index
    %208 = vector.load %arg6[%c0_105, %c0_106] : memref<128x256xbf16, #tpu.memory_space<vmem>>, vector<128x256xbf16>
    %cst_107 = arith.constant dense<0.000000e+00> : vector<8x256xf32>
    %209 = tpu.matmul %207, %208, %cst_107 {dimension_numbers = #tpu.dot_dimension_numbers<[1], [0], [0], [1], [0, 0, 1, 1], [], []>} : vector<8x128xbf16>, vector<128x256xbf16>, vector<8x256xf32> -> vector<8x256xf32>
    %c0_108 = arith.constant 0 : index
    %c0_109 = arith.constant 0 : index
    %210 = vector.load %arg7[%c0_108, %c0_109] : memref<1x256xf32, #tpu.memory_space<vmem>>, vector<1x256xf32>
    %211 = vector.broadcast %210 : vector<1x256xf32> to vector<8x256xf32>
    %212 = arith.addf %209, %211 : vector<8x256xf32>
    %213 = arith.truncf %212 : vector<8x256xf32> to vector<8x256xbf16>
    %c0_110 = arith.constant 0 : index
    %c0_111 = arith.constant 0 : index
    %214 = vector.load %arg8[%c0_110, %c0_111] : memref<256x256xbf16, #tpu.memory_space<vmem>>, vector<256x256xbf16>
    %cst_112 = arith.constant dense<0.000000e+00> : vector<8x256xf32>
    %215 = tpu.matmul %213, %214, %cst_112 {dimension_numbers = #tpu.dot_dimension_numbers<[1], [0], [0], [1], [0, 0, 1, 1], [], []>} : vector<8x256xbf16>, vector<256x256xbf16>, vector<8x256xf32> -> vector<8x256xf32>
    %c0_113 = arith.constant 0 : index
    %c0_114 = arith.constant 0 : index
    %216 = vector.load %arg9[%c0_113, %c0_114] : memref<1x256xf32, #tpu.memory_space<vmem>>, vector<1x256xf32>
    %217 = vector.broadcast %216 : vector<1x256xf32> to vector<8x256xf32>
    %218 = arith.addf %215, %217 : vector<8x256xf32>
    %cst_115 = arith.constant 0.000000e+00 : f32
    %219 = vector.broadcast %cst_115 : f32 to vector<8x256xf32>
    %220 = arith.maximumf %218, %219 : vector<8x256xf32>
    %221 = arith.truncf %220 : vector<8x256xf32> to vector<8x256xbf16>
    %c0_116 = arith.constant 0 : index
    %c0_117 = arith.constant 0 : index
    %222 = vector.load %arg10[%c0_116, %c0_117] : memref<256x128xbf16, #tpu.memory_space<vmem>>, vector<256x128xbf16>
    %cst_118 = arith.constant dense<0.000000e+00> : vector<8x128xf32>
    %223 = tpu.matmul %221, %222, %cst_118 {dimension_numbers = #tpu.dot_dimension_numbers<[1], [0], [0], [1], [0, 0, 1, 1], [], []>} : vector<8x256xbf16>, vector<256x128xbf16>, vector<8x128xf32> -> vector<8x128xf32>
    %c0_119 = arith.constant 0 : index
    %c0_120 = arith.constant 0 : index
    %224 = vector.load %arg11[%c0_119, %c0_120] : memref<1x128xf32, #tpu.memory_space<vmem>>, vector<1x128xf32>
    %225 = vector.broadcast %224 : vector<1x128xf32> to vector<8x128xf32>
    %226 = arith.addf %223, %225 : vector<8x128xf32>
    %c0_121 = arith.constant 0 : index
    %c0_122 = arith.constant 0 : index
    %227 = vector.load %arg12[%c0_121, %c0_122] : memref<8x256xf32, #tpu.memory_space<vmem>>, vector<8x256xf32>
    tpu.vector_store %arg12[%c0_121, %c0_122], %212 {strides = array<i32>} : memref<8x256xf32, #tpu.memory_space<vmem>>, vector<8x256xf32>,
    %c0_123 = arith.constant 0 : index
    %c0_124 = arith.constant 0 : index
    %228 = vector.load %arg13[%c0_123, %c0_124] : memref<8x128xf32, #tpu.memory_space<vmem>>, vector<8x128xf32>
    tpu.vector_store %arg13[%c0_123, %c0_124], %226 {strides = array<i32>} : memref<8x128xf32, #tpu.memory_space<vmem>>, vector<8x128xf32>,
    return
  }
}

</mosaic_0001>

<llo_original>
// kernel: tpu_custom_call.1
$region0: #{tpu_custom_call.1}
  #allocation0 [shape = 'u32[]', space=smem, size = 0x4, offset = 0x4, fixed_abs, tag = 'smem constant byte address 0x4 - core index']
  #allocation1 [shape = 'u32[72,128]{1,0:T(1,128)}', space=vmem, size = 0x9000, scoped, tag = 'internal scratch']
  %s0 = inlined_call_operand.hbm [shape: bf16[128,128], index: 0, kind: input, shape index: {}]
  %s1 = inlined_call_operand.hbm [shape: bf16[128,128], index: 1, kind: input, shape index: {}]
  %s2 = inlined_call_operand.hbm [shape: bf16[5,128,128], index: 2, kind: input, shape index: {}]
  %s3 = inlined_call_operand.hbm [shape: bf16[5,128,128], index: 3, kind: input, shape index: {}]
  %s4 = inlined_call_operand.hbm [shape: f32[5,8,128], index: 4, kind: input, shape index: {}]
  %s5 = inlined_call_operand.vmem [shape: bf16[8,128], index: 5, kind: input, shape index: {}]
  %s6 = inlined_call_operand.hbm [shape: bf16[128,256], index: 6, kind: input, shape index: {}]
  %s7 = inlined_call_operand.vmem [shape: f32[1,256], index: 7, kind: input, shape index: {}]
  %s8 = inlined_call_operand.hbm [shape: bf16[256,256], index: 8, kind: input, shape index: {}]
  %s9 = inlined_call_operand.vmem [shape: f32[1,256], index: 9, kind: input, shape index: {}]
  %s10 = inlined_call_operand.hbm [shape: bf16[256,128], index: 10, kind: input, shape index: {}]
  %s11 = inlined_call_operand.vmem [shape: f32[1,128], index: 11, kind: input, shape index: {}]
  %s12 = inlined_call_operand.hbm [shape: f32[8,256], index: 12, kind: output, shape index: {0}]
  %s13 = inlined_call_operand.hbm [shape: f32[8,128], index: 13, kind: output, shape index: {1}]
  %14 = xla_tuple %s12, %s13
  %s15 = sld [smem:[#allocation0]]
  $region98: #{tpu_custom_call.1} parent=0
    _
  %s17 = ssub.s32 1, %s15
  %s18 = scalar_select 0, %s17, %s15
  $region1: #{tpu_custom_call.1} parent=0
    #allocation2 [shape = 'u8[32768]{0}', space=vmem, size = 0x8000, scoped, tag = 'input window, operand 0, single buffered']
    #allocation3 [shape = 's32[1]{0}', space=sflag, size = 0x4, scoped, tag = 'scoped memory for tpu_custom_call.1']
    #allocation4 [shape = 's32[1]{0}', space=sflag, size = 0x4, scoped, tag = 'scoped memory for tpu_custom_call.1']
    #allocation5 [shape = 'u8[32768]{0}', space=vmem, size = 0x8000, scoped, tag = 'input window, operand 1, single buffered']
    #allocation6 [shape = 's32[1]{0}', space=sflag, size = 0x4, scoped, tag = 'scoped memory for tpu_custom_call.1']
    #allocation7 [shape = 'u8[163840]{0}', space=vmem, size = 0x28000, scoped, tag = 'input window, operand 2, single buffered']
    #allocation8 [shape = 'u8[163840]{0}', space=vmem, size = 0x28000, scoped, tag = 'input window, operand 3, single buffered']
    #allocation9 [shape = 's32[1]{0}', space=sflag, size = 0x4, scoped, tag = 'scoped memory for tpu_custom_call.1']
    #allocation10 [shape = 'u8[20480]{0}', space=vmem, size = 0x5000, scoped, tag = 'input window, operand 4, single buffered']
    #allocation11 [shape = 'u8[65536]{0}', space=vmem, size = 0x10000, scoped, tag = 'input window, operand 6, single buffered']
    #allocation12 [shape = 's32[1]{0}', space=sflag, size = 0x4, scoped, tag = 'scoped memory for tpu_custom_call.1']
    #allocation13 [shape = 'u8[131072]{0}', space=vmem, size = 0x20000, scoped, tag = 'input window, operand 8, single buffered']
    #allocation14 [shape = 'u8[65536]{0}', space=vmem, size = 0x10000, scoped, tag = 'input window, operand 10, single buffered']
    #allocation15 [shape = 's32[1]{0}', space=sflag, size = 0x4, scoped, tag = 'scoped memory for tpu_custom_call.1']
    #allocation16 [shape = 'u8[8192]{0}', space=vmem, size = 0x2000, scoped, tag = 'output window, operand 0, single buffered']
    #allocation17 [shape = 'u8[4096]{0}', space=vmem, size = 0x1000, scoped, tag = 'output window, operand 1, single buffered']
    #allocation18 [shape = 's32[1]{0}', space=sflag, size = 0x4, scoped, tag = 'scoped memory for tpu_custom_call.1']
    %19 = vsyncpa [#allocation3], 0
    %20 = vsyncpa [#allocation6], 0
    %21 = vsyncpa [#allocation9], 0
    %22 = vsyncpa [#allocation12], 0
    %23 = vsyncpa [#allocation15], 0
    %24 = vsyncpa [#allocation4], 0
    %25 = vsyncpa [#allocation18], 0
    // Predicated region
    $region2: #{tpu_custom_call.1} parent=1 // pred_check
      _
    $region3: #{tpu_custom_call.1} parent=1 // pred_check_branch
      %27 = sbr.rel (0) target = $region5
    $region4: #{tpu_custom_call.1} parent=1 // pred_region
      %29 = vsyncadd [#allocation3], 0
      %s30 = sshll.u32 %s0, 4
      %s31 = int_to_ptr.hbm [resolvable:$true] %s30
      %s32 = sshll.u32 [#allocation2], 4
      %s33 = int_to_ptr.vmem [resolvable:$true] %s32
      %38 = dma.hbm_to_vmem [thread:$0]  %s31, 1024, %s33, [#allocation3], 64, 64, 4
    $region5: #{tpu_custom_call.1} parent=1 // pred_fallthru
      _
    // Predicated region
    $region6: #{tpu_custom_call.1} parent=1 // pred_check
      _
    $region7: #{tpu_custom_call.1} parent=1 // pred_check_branch
      %40 = sbr.rel (0) target = $region9
    $region8: #{tpu_custom_call.1} parent=1 // pred_region
      %42 = vsyncadd [#allocation6], 0
      %s43 = sshll.u32 %s1, 4
      %s44 = int_to_ptr.hbm [resolvable:$true] %s43
      %s45 = sshll.u32 [#allocation5], 4
      %s46 = int_to_ptr.vmem [resolvable:$true] %s45
      %51 = dma.hbm_to_vmem [thread:$0]  %s44, 1024, %s46, [#allocation6], 64, 64, 4
    $region9: #{tpu_custom_call.1} parent=1 // pred_fallthru
      _
    // Predicated region
    $region10: #{tpu_custom_call.1} parent=1 // pred_check
      _
    $region11: #{tpu_custom_call.1} parent=1 // pred_check_branch
      %53 = sbr.rel (0) target = $region13
    $region12: #{tpu_custom_call.1} parent=1 // pred_region
      %55 = vsyncadd [#allocation6], 0
      %s56 = sshll.u32 %s2, 4
      %s57 = int_to_ptr.hbm [resolvable:$true] %s56
      %s58 = sshll.u32 [#allocation7], 4
      %s59 = int_to_ptr.vmem [resolvable:$true] %s58
      %64 = dma.hbm_to_vmem [thread:$0]  %s57, 5120, %s59, [#allocation6], 64, 64, 4
    $region13: #{tpu_custom_call.1} parent=1 // pred_fallthru
      _
    // Predicated region
    $region14: #{tpu_custom_call.1} parent=1 // pred_check
      _
    $region15: #{tpu_custom_call.1} parent=1 // pred_check_branch
      %66 = sbr.rel (0) target = $region17
    $region16: #{tpu_custom_call.1} parent=1 // pred_region
      %68 = vsyncadd [#allocation9], 0
      %s69 = sshll.u32 %s3, 4
      %s70 = int_to_ptr.hbm [resolvable:$true] %s69
      %s71 = sshll.u32 [#allocation8], 4
      %s72 = int_to_ptr.vmem [resolvable:$true] %s71
      %77 = dma.hbm_to_vmem [thread:$0]  %s70, 5120, %s72, [#allocation9], 64, 64, 4
    $region17: #{tpu_custom_call.1} parent=1 // pred_fallthru
      _
    // Predicated region
    $region18: #{tpu_custom_call.1} parent=1 // pred_check
      _
    $region19: #{tpu_custom_call.1} parent=1 // pred_check_branch
      %79 = sbr.rel (0) target = $region21
    $region20: #{tpu_custom_call.1} parent=1 // pred_region
      %81 = vsyncadd [#allocation9], 0
      %s82 = sshll.u32 %s4, 4
      %s83 = int_to_ptr.hbm [resolvable:$true] %s82
      %s84 = sshll.u32 [#allocation10], 4
      %s85 = int_to_ptr.vmem [resolvable:$true] %s84
      %90 = dma.hbm_to_vmem [thread:$0]  %s83, 640, %s85, [#allocation9], 128, 128, 8
    $region21: #{tpu_custom_call.1} parent=1 // pred_fallthru
      _
    // Predicated region
    $region22: #{tpu_custom_call.1} parent=1 // pred_check
      _
    $region23: #{tpu_custom_call.1} parent=1 // pred_check_branch
      %92 = sbr.rel (0) target = $region25
    $region24: #{tpu_custom_call.1} parent=1 // pred_region
      _
    $region25: #{tpu_custom_call.1} parent=1 // pred_fallthru
      _
    // Predicated region
    $region26: #{tpu_custom_call.1} parent=1 // pred_check
      _
    $region27: #{tpu_custom_call.1} parent=1 // pred_check_branch
      %94 = sbr.rel (0) target = $region29
    $region28: #{tpu_custom_call.1} parent=1 // pred_region
      %96 = vsyncadd [#allocation12], 0
      %s97 = sshll.u32 %s6, 4
      %s98 = int_to_ptr.hbm [resolvable:$true] %s97
      %s99 = sshll.u32 [#allocation11], 4
      %s100 = int_to_ptr.vmem [resolvable:$true] %s99
      %105 = dma.hbm_to_vmem [thread:$0]  %s98, 2048, %s100, [#allocation12], 128, 128, 8
    $region29: #{tpu_custom_call.1} parent=1 // pred_fallthru
      _
    // Predicated region
    $region30: #{tpu_custom_call.1} parent=1 // pred_check
      _
    $region31: #{tpu_custom_call.1} parent=1 // pred_check_branch
      %107 = sbr.rel (0) target = $region33
    $region32: #{tpu_custom_call.1} parent=1 // pred_region
      _
    $region33: #{tpu_custom_call.1} parent=1 // pred_fallthru
      _
    // Predicated region
    $region34: #{tpu_custom_call.1} parent=1 // pred_check
      _
    $region35: #{tpu_custom_call.1} parent=1 // pred_check_branch
      %109 = sbr.rel (0) target = $region37
    $region36: #{tpu_custom_call.1} parent=1 // pred_region
      %111 = vsyncadd [#allocation12], 0
      %s112 = sshll.u32 %s8, 4
      %s113 = int_to_ptr.hbm [resolvable:$true] %s112
      %s114 = sshll.u32 [#allocation13], 4
      %s115 = int_to_ptr.vmem [resolvable:$true] %s114
      %120 = dma.hbm_to_vmem [thread:$0]  %s113, 4096, %s115, [#allocation12], 128, 128, 8
    $region37: #{tpu_custom_call.1} parent=1 // pred_fallthru
      _
    // Predicated region
    $region38: #{tpu_custom_call.1} parent=1 // pred_check
      _
    $region39: #{tpu_custom_call.1} parent=1 // pred_check_branch
      %122 = sbr.rel (0) target = $region41
    $region40: #{tpu_custom_call.1} parent=1 // pred_region
      _
    $region41: #{tpu_custom_call.1} parent=1 // pred_fallthru
      _
    // Predicated region
    $region42: #{tpu_custom_call.1} parent=1 // pred_check
      _
    $region43: #{tpu_custom_call.1} parent=1 // pred_check_branch
      %124 = sbr.rel (0) target = $region45
    $region44: #{tpu_custom_call.1} parent=1 // pred_region
      %126 = vsyncadd [#allocation15], 0
      %s127 = sshll.u32 %s10, 4
      %s128 = int_to_ptr.hbm [resolvable:$true] %s127
      %s129 = sshll.u32 [#allocation14], 4
      %s130 = int_to_ptr.vmem [resolvable:$true] %s129
      %135 = dma.hbm_to_vmem [thread:$0]  %s128, 2048, %s130, [#allocation15], 64, 64, 4
    $region45: #{tpu_custom_call.1} parent=1 // pred_fallthru
      _
    // Predicated region
    $region46: #{tpu_custom_call.1} parent=1 // pred_check
      _
    $region47: #{tpu_custom_call.1} parent=1 // pred_check_branch
      %137 = sbr.rel (0) target = $region49
    $region48: #{tpu_custom_call.1} parent=1 // pred_region
      _
    $region49: #{tpu_custom_call.1} parent=1 // pred_fallthru
      _
    // Predicated region
    $region50: #{tpu_custom_call.1} parent=1 // pred_check
      _
    $region51: #{tpu_custom_call.1} parent=1 // pred_check_branch
      %139 = sbr.rel (0) target = $region53
    $region52: #{tpu_custom_call.1} parent=1 // pred_region
      %141 = dma.done [#allocation3], 1024
    $region53: #{tpu_custom_call.1} parent=1 // pred_fallthru
      _
    // Predicated region
    $region54: #{tpu_custom_call.1} parent=1 // pred_check
      _
    $region55: #{tpu_custom_call.1} parent=1 // pred_check_branch
      %143 = sbr.rel (0) target = $region57
    $region56: #{tpu_custom_call.1} parent=1 // pred_region
      %145 = dma.done [#allocation6], 1024
    $region57: #{tpu_custom_call.1} parent=1 // pred_fallthru
      _
    // Predicated region
    $region58: #{tpu_custom_call.1} parent=1 // pred_check
      _
    $region59: #{tpu_custom_call.1} parent=1 // pred_check_branch
      %147 = sbr.rel (0) target = $region61
    $region60: #{tpu_custom_call.1} parent=1 // pred_region
      %149 = dma.done [#allocation6], 5120
    $region61: #{tpu_custom_call.1} parent=1 // pred_fallthru
      _
    // Predicated region
    $region62: #{tpu_custom_call.1} parent=1 // pred_check
      _
    $region63: #{tpu_custom_call.1} parent=1 // pred_check_branch
      %151 = sbr.rel (0) target = $region65
    $region64: #{tpu_custom_call.1} parent=1 // pred_region
      %153 = dma.done [#allocation9], 5120
    $region65: #{tpu_custom_call.1} parent=1 // pred_fallthru
      _
    // Predicated region
    $region66: #{tpu_custom_call.1} parent=1 // pred_check
      _
    $region67: #{tpu_custom_call.1} parent=1 // pred_check_branch
      %155 = sbr.rel (0) target = $region69
    $region68: #{tpu_custom_call.1} parent=1 // pred_region
      %157 = dma.done [#allocation9], 640
    $region69: #{tpu_custom_call.1} parent=1 // pred_fallthru
      _
    // Predicated region
    $region70: #{tpu_custom_call.1} parent=1 // pred_check
      _
    $region71: #{tpu_custom_call.1} parent=1 // pred_check_branch
      %159 = sbr.rel (0) target = $region73
    $region72: #{tpu_custom_call.1} parent=1 // pred_region
      %161 = dma.done [#allocation12], 2048
    $region73: #{tpu_custom_call.1} parent=1 // pred_fallthru
      _
    // Predicated region
    $region74: #{tpu_custom_call.1} parent=1 // pred_check
      _
    $region75: #{tpu_custom_call.1} parent=1 // pred_check_branch
      %163 = sbr.rel (0) target = $region77
    $region76: #{tpu_custom_call.1} parent=1 // pred_region
      %165 = dma.done [#allocation12], 4096
    $region77: #{tpu_custom_call.1} parent=1 // pred_fallthru
      _
    // Predicated region
    $region78: #{tpu_custom_call.1} parent=1 // pred_check
      _
    $region79: #{tpu_custom_call.1} parent=1 // pred_check_branch
      %167 = sbr.rel (0) target = $region81
    $region80: #{tpu_custom_call.1} parent=1 // pred_region
      %169 = dma.done [#allocation15], 2048
    $region81: #{tpu_custom_call.1} parent=1 // pred_fallthru
      _
    %v170 = vld [vmem:[#allocation2] sm:$0xf]
    %v171 = vld [vmem:[#allocation2 + $0x4] sm:$0xf]
    %v172 = vld [vmem:[#allocation2 + $0x8] sm:$0xf]
    %v173 = vld [vmem:[#allocation2 + $0xc] sm:$0xf]
    %v174 = vld [vmem:[#allocation2 + $0x10] sm:$0xf]
    %v175 = vld [vmem:[#allocation2 + $0x14] sm:$0xf]
    %v176 = vld [vmem:[#allocation2 + $0x18] sm:$0xf]
    %v177 = vld [vmem:[#allocation2 + $0x1c] sm:$0xf]
    %v178 = vld [vmem:[#allocation2 + $0x20] sm:$0xf]
    %v179 = vld [vmem:[#allocation2 + $0x24] sm:$0xf]
    %v180 = vld [vmem:[#allocation2 + $0x28] sm:$0xf]
    %v181 = vld [vmem:[#allocation2 + $0x2c] sm:$0xf]
    %v182 = vld [vmem:[#allocation2 + $0x30] sm:$0xf]
    %v183 = vld [vmem:[#allocation2 + $0x34] sm:$0xf]
    %v184 = vld [vmem:[#allocation2 + $0x38] sm:$0xf]
    %v185 = vld [vmem:[#allocation2 + $0x3c] sm:$0xf]
    %v186 = vld [vmem:[#allocation5] sm:$0xf]
    %v187 = vld [vmem:[#allocation5 + $0x4] sm:$0xf]
    %v188 = vld [vmem:[#allocation5 + $0x8] sm:$0xf]
    %v189 = vld [vmem:[#allocation5 + $0xc] sm:$0xf]
    %v190 = vld [vmem:[#allocation5 + $0x10] sm:$0xf]
    %v191 = vld [vmem:[#allocation5 + $0x14] sm:$0xf]
    %v192 = vld [vmem:[#allocation5 + $0x18] sm:$0xf]
    %v193 = vld [vmem:[#allocation5 + $0x1c] sm:$0xf]
    %v194 = vld [vmem:[#allocation5 + $0x20] sm:$0xf]
    %v195 = vld [vmem:[#allocation5 + $0x24] sm:$0xf]
    %v196 = vld [vmem:[#allocation5 + $0x28] sm:$0xf]
    %v197 = vld [vmem:[#allocation5 + $0x2c] sm:$0xf]
    %v198 = vld [vmem:[#allocation5 + $0x30] sm:$0xf]
    %v199 = vld [vmem:[#allocation5 + $0x34] sm:$0xf]
    %v200 = vld [vmem:[#allocation5 + $0x38] sm:$0xf]
    %v201 = vld [vmem:[#allocation5 + $0x3c] sm:$0xf]
    %v202 = vld [vmem:[#allocation8] sm:$0xf]
    %v203 = vld [vmem:[#allocation8 + $0x4] sm:$0xf]
    %v204 = vld [vmem:[#allocation8 + $0x8] sm:$0xf]
    %v205 = vld [vmem:[#allocation8 + $0xc] sm:$0xf]
    %v206 = vld [vmem:[#allocation8 + $0x10] sm:$0xf]
    %v207 = vld [vmem:[#allocation8 + $0x14] sm:$0xf]
    %v208 = vld [vmem:[#allocation8 + $0x18] sm:$0xf]
    %v209 = vld [vmem:[#allocation8 + $0x1c] sm:$0xf]
    %v210 = vld [vmem:[#allocation8 + $0x20] sm:$0xf]
    %v211 = vld [vmem:[#allocation8 + $0x24] sm:$0xf]
    %v212 = vld [vmem:[#allocation8 + $0x28] sm:$0xf]
    %v213 = vld [vmem:[#allocation8 + $0x2c] sm:$0xf]
    %v214 = vld [vmem:[#allocation8 + $0x30] sm:$0xf]
    %v215 = vld [vmem:[#allocation8 + $0x34] sm:$0xf]
    %v216 = vld [vmem:[#allocation8 + $0x38] sm:$0xf]
    %v217 = vld [vmem:[#allocation8 + $0x3c] sm:$0xf]
    %v234 = vunpack.c.l.b16 %v186
    %v235 = vunpack.c.l.b16 %v187
    %v236 = vunpack.c.l.b16 %v188
    %v237 = vunpack.c.l.b16 %v189
    %v238 = vunpack.c.l.b16 %v190
    %v239 = vunpack.c.l.b16 %v191
    %v240 = vunpack.c.l.b16 %v192
    %v241 = vunpack.c.l.b16 %v193
    %v242 = vunpack.c.l.b16 %v194
    %v243 = vunpack.c.l.b16 %v195
    %v244 = vunpack.c.l.b16 %v196
    %v245 = vunpack.c.l.b16 %v197
    %v246 = vunpack.c.l.b16 %v198
    %v247 = vunpack.c.l.b16 %v199
    %v248 = vunpack.c.l.b16 %v200
    %v249 = vunpack.c.l.b16 %v201
    %v250 = vpack.c.b16 %v235, %v234
    %v251 = vpack.c.b16 %v237, %v236
    %v252 = vpack.c.b16 %v239, %v238
    %v253 = vpack.c.b16 %v241, %v240
    %v254 = vpack.c.b16 %v243, %v242
    %v255 = vpack.c.b16 %v245, %v244
    %v256 = vpack.c.b16 %v247, %v246
    %v257 = vpack.c.b16 %v249, %v248
    %v282 = vunpack.c.l.b16 %v202
    %v283 = vunpack.c.l.b16 %v203
    %v284 = vunpack.c.l.b16 %v204
    %v285 = vunpack.c.l.b16 %v205
    %v286 = vunpack.c.l.b16 %v206
    %v287 = vunpack.c.l.b16 %v207
    %v288 = vunpack.c.l.b16 %v208
    %v289 = vunpack.c.l.b16 %v209
    %v290 = vunpack.c.l.b16 %v210
    %v291 = vunpack.c.l.b16 %v211
    %v292 = vunpack.c.l.b16 %v212
    %v293 = vunpack.c.l.b16 %v213
    %v294 = vunpack.c.l.b16 %v214
    %v295 = vunpack.c.l.b16 %v215
    %v296 = vunpack.c.l.b16 %v216
    %v297 = vunpack.c.l.b16 %v217
    %v298 = vpack.c.b16 %v283, %v282
    %v299 = vpack.c.b16 %v285, %v284
    %v300 = vpack.c.b16 %v287, %v286
    %v301 = vpack.c.b16 %v289, %v288
    %v302 = vpack.c.b16 %v291, %v290
    %v303 = vpack.c.b16 %v293, %v292
    %v304 = vpack.c.b16 %v295, %v294
    %v305 = vpack.c.b16 %v297, %v296
    %314 = vmatpush.bf16.msra.mxu0 %v305
    %315 = vmatpush.bf16.msra.mxu0 %v304
    %316 = vmatpush.bf16.msra.mxu0 %v303
    %317 = vmatpush.bf16.msra.mxu0 %v302
    %318 = vmatpush.bf16.msra.mxu0 %v301
    %319 = vmatpush.bf16.msra.mxu0 %v300
    %320 = vmatpush.bf16.msra.mxu0 %v299
    %321 = vmatpush.bf16.msra.mxu0 %v298
    %322 = vmatmul.bf16.gmra.mxu0 %v250
    %v323 = vpop.f32.mrf.mxu0
    %v324 = vadd.f32 0.0, %v323
    %v325 = vpop.f32.mrf.mxu0
    %v326 = vadd.f32 0.0, %v325
    %327 = vmatmul.bf16.gmra.mxu0 %v251
    %v328 = vpop.f32.mrf.mxu0
    %v329 = vadd.f32 0.0, %v328
    %v330 = vpop.f32.mrf.mxu0
    %v331 = vadd.f32 0.0, %v330
    %332 = vmatmul.bf16.gmra.mxu0 %v252
    %v333 = vpop.f32.mrf.mxu0
    %v334 = vadd.f32 0.0, %v333
    %v335 = vpop.f32.mrf.mxu0
    %v336 = vadd.f32 0.0, %v335
    %337 = vmatmul.bf16.gmra.mxu0 %v253
    %v338 = vpop.f32.mrf.mxu0
    %v339 = vadd.f32 0.0, %v338
    %v340 = vpop.f32.mrf.mxu0
    %v341 = vadd.f32 0.0, %v340
    %342 = vmatmul.bf16.gmra.mxu0 %v254
    %v343 = vpop.f32.mrf.mxu0
    %v344 = vadd.f32 0.0, %v343
    %v345 = vpop.f32.mrf.mxu0
    %v346 = vadd.f32 0.0, %v345
    %347 = vmatmul.bf16.gmra.mxu0 %v255
    %v348 = vpop.f32.mrf.mxu0
    %v349 = vadd.f32 0.0, %v348
    %v350 = vpop.f32.mrf.mxu0
    %v351 = vadd.f32 0.0, %v350
    %352 = vmatmul.bf16.gmra.mxu0 %v256
    %v353 = vpop.f32.mrf.mxu0
    %v354 = vadd.f32 0.0, %v353
    %v355 = vpop.f32.mrf.mxu0
    %v356 = vadd.f32 0.0, %v355
    %357 = vmatmul.bf16.gmra.mxu0 %v257
    %v358 = vpop.f32.mrf.mxu0
    %v359 = vadd.f32 0.0, %v358
    %v360 = vpop.f32.mrf.mxu0
    %v361 = vadd.f32 0.0, %v360
    %362 = vdwg.mxu0
    %v363 = vpack.c.bf16 %v326, %v324
    %v364 = vpack.c.bf16 %v331, %v329
    %v365 = vpack.c.bf16 %v336, %v334
    %v366 = vpack.c.bf16 %v341, %v339
    %v367 = vpack.c.bf16 %v346, %v344
    %v368 = vpack.c.bf16 %v351, %v349
    %v369 = vpack.c.bf16 %v356, %v354
    %v370 = vpack.c.bf16 %v361, %v359
    %v371 = vld [vmem:[#allocation7] sm:$0xf]
    %v372 = vld [vmem:[#allocation7 + $0x4] sm:$0xf]
    %v373 = vld [vmem:[#allocation7 + $0x8] sm:$0xf]
    %v374 = vld [vmem:[#allocation7 + $0xc] sm:$0xf]
    %v375 = vld [vmem:[#allocation7 + $0x10] sm:$0xf]
    %v376 = vld [vmem:[#allocation7 + $0x14] sm:$0xf]
    %v377 = vld [vmem:[#allocation7 + $0x18] sm:$0xf]
    %v378 = vld [vmem:[#allocation7 + $0x1c] sm:$0xf]
    %v379 = vld [vmem:[#allocation7 + $0x20] sm:$0xf]
    %v380 = vld [vmem:[#allocation7 + $0x24] sm:$0xf]
    %v381 = vld [vmem:[#allocation7 + $0x28] sm:$0xf]
    %v382 = vld [vmem:[#allocation7 + $0x2c] sm:$0xf]
    %v383 = vld [vmem:[#allocation7 + $0x30] sm:$0xf]
    %v384 = vld [vmem:[#allocation7 + $0x34] sm:$0xf]
    %v385 = vld [vmem:[#allocation7 + $0x38] sm:$0xf]
    %v386 = vld [vmem:[#allocation7 + $0x3c] sm:$0xf]
    %v387 = vunpack.c.l.bf16 %v371
    %v388 = vunpack.c.l.bf16 %v372
    %v389 = vunpack.c.l.bf16 %v373
    %v390 = vunpack.c.l.bf16 %v374
    %v391 = vunpack.c.l.bf16 %v375
    %v392 = vunpack.c.l.bf16 %v376
    %v393 = vunpack.c.l.bf16 %v377
    %v394 = vunpack.c.l.bf16 %v378
    %v395 = vunpack.c.l.bf16 %v379
    %v396 = vunpack.c.l.bf16 %v380
    %v397 = vunpack.c.l.bf16 %v381
    %v398 = vunpack.c.l.bf16 %v382
    %v399 = vunpack.c.l.bf16 %v383
    %v400 = vunpack.c.l.bf16 %v384
    %v401 = vunpack.c.l.bf16 %v385
    %v402 = vunpack.c.l.bf16 %v386
    %v419 = vunpack.c.l.b16 %v170
    %v420 = vunpack.c.l.b16 %v171
    %v421 = vunpack.c.l.b16 %v172
    %v422 = vunpack.c.l.b16 %v173
    %v423 = vunpack.c.l.b16 %v174
    %v424 = vunpack.c.l.b16 %v175
    %v425 = vunpack.c.l.b16 %v176
    %v426 = vunpack.c.l.b16 %v177
    %v427 = vunpack.c.l.b16 %v178
    %v428 = vunpack.c.l.b16 %v179
    %v429 = vunpack.c.l.b16 %v180
    %v430 = vunpack.c.l.b16 %v181
    %v431 = vunpack.c.l.b16 %v182
    %v432 = vunpack.c.l.b16 %v183
    %v433 = vunpack.c.l.b16 %v184
    %v434 = vunpack.c.l.b16 %v185
    %v435 = vpack.c.b16 %v420, %v419
    %v436 = vpack.c.b16 %v422, %v421
    %v437 = vpack.c.b16 %v424, %v423
    %v438 = vpack.c.b16 %v426, %v425
    %v439 = vpack.c.b16 %v428, %v427
    %v440 = vpack.c.b16 %v430, %v429
    %v441 = vpack.c.b16 %v432, %v431
    %v442 = vpack.c.b16 %v434, %v433
    %451 = vmatpush.bf16.msra.mxu0 %v370
    %452 = vmatpush.bf16.msra.mxu0 %v369
    %453 = vmatpush.bf16.msra.mxu0 %v368
    %454 = vmatpush.bf16.msra.mxu0 %v367
    %455 = vmatpush.bf16.msra.mxu0 %v366
    %456 = vmatpush.bf16.msra.mxu0 %v365
    %457 = vmatpush.bf16.msra.mxu0 %v364
    %458 = vmatpush.bf16.msra.mxu0 %v363
    %459 = vmatmul.bf16.gmra.mxu0 %v435
    %v460 = vpop.f32.mrf.mxu0
    %v461 = vadd.f32 %v387, %v460
    %v462 = vpop.f32.mrf.mxu0
    %v463 = vadd.f32 %v388, %v462
    %464 = vmatmul.bf16.gmra.mxu0 %v436
    %v465 = vpop.f32.mrf.mxu0
    %v466 = vadd.f32 %v389, %v465
    %v467 = vpop.f32.mrf.mxu0
    %v468 = vadd.f32 %v390, %v467
    %469 = vmatmul.bf16.gmra.mxu0 %v437
    %v470 = vpop.f32.mrf.mxu0
    %v471 = vadd.f32 %v391, %v470
    %v472 = vpop.f32.mrf.mxu0
    %v473 = vadd.f32 %v392, %v472
    %474 = vmatmul.bf16.gmra.mxu0 %v438
    %v475 = vpop.f32.mrf.mxu0
    %v476 = vadd.f32 %v393, %v475
    %v477 = vpop.f32.mrf.mxu0
    %v478 = vadd.f32 %v394, %v477
    %479 = vmatmul.bf16.gmra.mxu0 %v439
    %v480 = vpop.f32.mrf.mxu0
    %v481 = vadd.f32 %v395, %v480
    %v482 = vpop.f32.mrf.mxu0
    %v483 = vadd.f32 %v396, %v482
    %484 = vmatmul.bf16.gmra.mxu0 %v440
    %v485 = vpop.f32.mrf.mxu0
    %v486 = vadd.f32 %v397, %v485
    %v487 = vpop.f32.mrf.mxu0
    %v488 = vadd.f32 %v398, %v487
    %489 = vmatmul.bf16.gmra.mxu0 %v441
    %v490 = vpop.f32.mrf.mxu0
    %v491 = vadd.f32 %v399, %v490
    %v492 = vpop.f32.mrf.mxu0
    %v493 = vadd.f32 %v400, %v492
    %494 = vmatmul.bf16.gmra.mxu0 %v442
    %v495 = vpop.f32.mrf.mxu0
    %v496 = vadd.f32 %v401, %v495
    %v497 = vpop.f32.mrf.mxu0
    %v498 = vadd.f32 %v402, %v497
    %499 = vdwg.mxu0
    %v500 = vadd.f32 %v461, %v463
    %v501 = vadd.f32 %v500, %v466
    %v502 = vadd.f32 %v501, %v468
    %v503 = vadd.f32 %v502, %v471
    %v504 = vadd.f32 %v503, %v473
    %v505 = vadd.f32 %v504, %v476
    %v506 = vadd.f32 %v505, %v478
    %v507 = vadd.f32 %v506, %v481
    %v508 = vadd.f32 %v507, %v483
    %v509 = vadd.f32 %v508, %v486
    %v510 = vadd.f32 %v509, %v488
    %v511 = vadd.f32 %v510, %v491
    %v512 = vadd.f32 %v511, %v493
    %v513 = vadd.f32 %v512, %v496
    %v514 = vadd.f32 %v513, %v498
    %v515 = vrot.slane %v514, 4
    %v516 = vadd.f32 %v514, %v515
    %v517 = vrot.slane %v516, 2
    %v518 = vadd.f32 %v516, %v517
    %v519 = vrot.slane %v518, 1
    %v520 = vadd.f32 %v518, %v519
    %v521 = vrcp.pop 128.0
    %v522 = vmul.f32 128.0, %v521
    %v523 = vsub.f32 1.0, %v522
    %v524 = vmul.f32 %v521, %v523
    %v525 = vadd.f32 %v521, %v524
    %vm526 = vweird.f32 %v521
    %v527 = vsel %vm526, %v521, %v525
    %v528 = vmul.f32 %v520, %v527
    %v529 = vmul.f32 %v461, %v461
    %v530 = vmul.f32 %v463, %v463
    %v531 = vmul.f32 %v466, %v466
    %v532 = vmul.f32 %v468, %v468
    %v533 = vmul.f32 %v471, %v471
    %v534 = vmul.f32 %v473, %v473
    %v535 = vmul.f32 %v476, %v476
    %v536 = vmul.f32 %v478, %v478
    %v537 = vmul.f32 %v481, %v481
    %v538 = vmul.f32 %v483, %v483
    %v539 = vmul.f32 %v486, %v486
    %v540 = vmul.f32 %v488, %v488
    %v541 = vmul.f32 %v491, %v491
    %v542 = vmul.f32 %v493, %v493
    %v543 = vmul.f32 %v496, %v496
    %v544 = vmul.f32 %v498, %v498
    %v545 = vadd.f32 %v529, %v530
    %v546 = vadd.f32 %v545, %v531
    %v547 = vadd.f32 %v546, %v532
    %v548 = vadd.f32 %v547, %v533
    %v549 = vadd.f32 %v548, %v534
    %v550 = vadd.f32 %v549, %v535
    %v551 = vadd.f32 %v550, %v536
    %v552 = vadd.f32 %v551, %v537
    %v553 = vadd.f32 %v552, %v538
    %v554 = vadd.f32 %v553, %v539
    %v555 = vadd.f32 %v554, %v540
    %v556 = vadd.f32 %v555, %v541
    %v557 = vadd.f32 %v556, %v542
    %v558 = vadd.f32 %v557, %v543
    %v559 = vadd.f32 %v558, %v544
    %v560 = vrot.slane %v559, 4
    %v561 = vadd.f32 %v559, %v560
    %v562 = vrot.slane %v561, 2
    %v563 = vadd.f32 %v561, %v562
    %v564 = vrot.slane %v563, 1
    %v565 = vadd.f32 %v563, %v564
    %v566 = vmul.f32 %v565, %v527
    %v567 = vmul.f32 %v528, %v528
    %v568 = vsub.f32 %v566, %v567
    %v569 = vmax.f32 %v568, 0.0
    %v570 = vld [vmem:[#allocation10] sm:$0xff]
    %v571 = vadd.f32 %v569, 1e-05
    %v572 = vrsqrt.pop %v571
    %v573 = vmul.f32 %v572, %v571
    %v574 = vmul.f32 %v573, %v572
    %v575 = vmul.f32 0.5, %v574
    %v576 = vsub.f32 1.5, %v575
    %v577 = vmul.f32 %v572, %v576
    %vm578 = vweird.f32 %v571
    %vm579 = vweird.f32 %v572
    %vm580 = vmor %vm578, %vm579
    %v581 = vsel %vm580, %v572, %v577
    %v582 = vmul.f32 %v570, %v581
    %v583 = vmul.f32 %v528, %v582
    %v585 = vrot.slane %v583, 7
    %v587 = vsub.f32 %v570, %v585
    %v588 = vperm.slane %v582, 0
    %v589 = vmul.f32 %v461, %v588
    %v590 = vmul.f32 %v463, %v588
    %v591 = vmul.f32 %v466, %v588
    %v592 = vmul.f32 %v468, %v588
    %v593 = vmul.f32 %v471, %v588
    %v594 = vmul.f32 %v473, %v588
    %v595 = vmul.f32 %v476, %v588
    %v596 = vmul.f32 %v478, %v588
    %v597 = vmul.f32 %v481, %v588
    %v598 = vmul.f32 %v483, %v588
    %v599 = vmul.f32 %v486, %v588
    %v600 = vmul.f32 %v488, %v588
    %v601 = vmul.f32 %v491, %v588
    %v602 = vmul.f32 %v493, %v588
    %v603 = vmul.f32 %v496, %v588
    %v604 = vmul.f32 %v498, %v588
    %v605 = vperm.slane %v587, 1
    %v606 = vadd.f32 %v589, %v605
    %v607 = vadd.f32 %v590, %v605
    %v608 = vadd.f32 %v591, %v605
    %v609 = vadd.f32 %v592, %v605
    %v610 = vadd.f32 %v593, %v605
    %v611 = vadd.f32 %v594, %v605
    %v612 = vadd.f32 %v595, %v605
    %v613 = vadd.f32 %v596, %v605
    %v614 = vadd.f32 %v597, %v605
    %v615 = vadd.f32 %v598, %v605
    %v616 = vadd.f32 %v599, %v605
    %v617 = vadd.f32 %v600, %v605
    %v618 = vadd.f32 %v601, %v605
    %v619 = vadd.f32 %v602, %v605
    %v620 = vadd.f32 %v603, %v605
    %v621 = vadd.f32 %v604, %v605
    %v622 = vmax.f32 %v606, 0.0
    %v623 = vmax.f32 %v607, 0.0
    %v624 = vmax.f32 %v608, 0.0
    %v625 = vmax.f32 %v609, 0.0
    %v626 = vmax.f32 %v610, 0.0
    %v627 = vmax.f32 %v611, 0.0
    %v628 = vmax.f32 %v612, 0.0
    %v629 = vmax.f32 %v613, 0.0
    %v630 = vmax.f32 %v614, 0.0
    %v631 = vmax.f32 %v615, 0.0
    %v632 = vmax.f32 %v616, 0.0
    %v633 = vmax.f32 %v617, 0.0
    %v634 = vmax.f32 %v618, 0.0
    %v635 = vmax.f32 %v619, 0.0
    %v636 = vmax.f32 %v620, 0.0
    %v637 = vmax.f32 %v621, 0.0
    %v638 = vpack.c.bf16 %v623, %v622
    %v639 = vpack.c.bf16 %v625, %v624
    %v640 = vpack.c.bf16 %v627, %v626
    %v641 = vpack.c.bf16 %v629, %v628
    %v642 = vpack.c.bf16 %v631, %v630
    %v643 = vpack.c.bf16 %v633, %v632
    %v644 = vpack.c.bf16 %v635, %v634
    %v645 = vpack.c.bf16 %v637, %v636
    %s646 = scalar_lea.vmem [#allocation8], 64
    %v647 = vld [vmem:[%s646] sm:$0xf]
    %v648 = vld [vmem:[%s646 + $0x4] sm:$0xf]
    %v649 = vld [vmem:[%s646 + $0x8] sm:$0xf]
    %v650 = vld [vmem:[%s646 + $0xc] sm:$0xf]
    %v651 = vld [vmem:[%s646 + $0x10] sm:$0xf]
    %v652 = vld [vmem:[%s646 + $0x14] sm:$0xf]
    %v653 = vld [vmem:[%s646 + $0x18] sm:$0xf]
    %v654 = vld [vmem:[%s646 + $0x1c] sm:$0xf]
    %v655 = vld [vmem:[%s646 + $0x20] sm:$0xf]
    %v656 = vld [vmem:[%s646 + $0x24] sm:$0xf]
    %v657 = vld [vmem:[%s646 + $0x28] sm:$0xf]
    %v658 = vld [vmem:[%s646 + $0x2c] sm:$0xf]
    %v659 = vld [vmem:[%s646 + $0x30] sm:$0xf]
    %v660 = vld [vmem:[%s646 + $0x34] sm:$0xf]
    %v661 = vld [vmem:[%s646 + $0x38] sm:$0xf]
    %v662 = vld [vmem:[%s646 + $0x3c] sm:$0xf]
    %v679 = vunpack.c.l.b16 %v647
    %v680 = vunpack.c.l.b16 %v648
    %v681 = vunpack.c.l.b16 %v649
    %v682 = vunpack.c.l.b16 %v650
    %v683 = vunpack.c.l.b16 %v651
    %v684 = vunpack.c.l.b16 %v652
    %v685 = vunpack.c.l.b16 %v653
    %v686 = vunpack.c.l.b16 %v654
    %v687 = vunpack.c.l.b16 %v655
    %v688 = vunpack.c.l.b16 %v656
    %v689 = vunpack.c.l.b16 %v657
    %v690 = vunpack.c.l.b16 %v658
    %v691 = vunpack.c.l.b16 %v659
    %v692 = vunpack.c.l.b16 %v660
    %v693 = vunpack.c.l.b16 %v661
    %v694 = vunpack.c.l.b16 %v662
    %v695 = vpack.c.b16 %v680, %v679
    %v696 = vpack.c.b16 %v682, %v681
    %v697 = vpack.c.b16 %v684, %v683
    %v698 = vpack.c.b16 %v686, %v685
    %v699 = vpack.c.b16 %v688, %v687
    %v700 = vpack.c.b16 %v690, %v689
    %v701 = vpack.c.b16 %v692, %v691
    %v702 = vpack.c.b16 %v694, %v693
    %711 = vmatpush.bf16.msra.mxu0 %v702
    %712 = vmatpush.bf16.msra.mxu0 %v701
    %713 = vmatpush.bf16.msra.mxu0 %v700
    %714 = vmatpush.bf16.msra.mxu0 %v699
    %715 = vmatpush.bf16.msra.mxu0 %v698
    %716 = vmatpush.bf16.msra.mxu0 %v697
    %717 = vmatpush.bf16.msra.mxu0 %v696
    %718 = vmatpush.bf16.msra.mxu0 %v695
    %719 = vmatmul.bf16.gmra.mxu0 %v638
    %v720 = vpop.f32.mrf.mxu0
    %v721 = vadd.f32 0.0, %v720
    %v722 = vpop.f32.mrf.mxu0
    %v723 = vadd.f32 0.0, %v722
    %724 = vmatmul.bf16.gmra.mxu0 %v639
    %v725 = vpop.f32.mrf.mxu0
    %v726 = vadd.f32 0.0, %v725
    %v727 = vpop.f32.mrf.mxu0
    %v728 = vadd.f32 0.0, %v727
    %729 = vmatmul.bf16.gmra.mxu0 %v640
    %v730 = vpop.f32.mrf.mxu0
    %v731 = vadd.f32 0.0, %v730
    %v732 = vpop.f32.mrf.mxu0
    %v733 = vadd.f32 0.0, %v732
    %734 = vmatmul.bf16.gmra.mxu0 %v641
    %v735 = vpop.f32.mrf.mxu0
    %v736 = vadd.f32 0.0, %v735
    %v737 = vpop.f32.mrf.mxu0
    %v738 = vadd.f32 0.0, %v737
    %739 = vmatmul.bf16.gmra.mxu0 %v642
    %v740 = vpop.f32.mrf.mxu0
    %v741 = vadd.f32 0.0, %v740
    %v742 = vpop.f32.mrf.mxu0
    %v743 = vadd.f32 0.0, %v742
    %744 = vmatmul.bf16.gmra.mxu0 %v643
    %v745 = vpop.f32.mrf.mxu0
    %v746 = vadd.f32 0.0, %v745
    %v747 = vpop.f32.mrf.mxu0
    %v748 = vadd.f32 0.0, %v747
    %749 = vmatmul.bf16.gmra.mxu0 %v644
    %v750 = vpop.f32.mrf.mxu0
    %v751 = vadd.f32 0.0, %v750
    %v752 = vpop.f32.mrf.mxu0
    %v753 = vadd.f32 0.0, %v752
    %754 = vmatmul.bf16.gmra.mxu0 %v645
    %v755 = vpop.f32.mrf.mxu0
    %v756 = vadd.f32 0.0, %v755
    %v757 = vpop.f32.mrf.mxu0
    %v758 = vadd.f32 0.0, %v757
    %759 = vdwg.mxu0
    %v760 = vpack.c.bf16 %v723, %v721
    %v761 = vpack.c.bf16 %v728, %v726
    %v762 = vpack.c.bf16 %v733, %v731
    %v763 = vpack.c.bf16 %v738, %v736
    %v764 = vpack.c.bf16 %v743, %v741
    %v765 = vpack.c.bf16 %v748, %v746
    %v766 = vpack.c.bf16 %v753, %v751
    %v767 = vpack.c.bf16 %v758, %v756
    %s768 = scalar_lea.vmem [#allocation7], 64
    %v769 = vld [vmem:[%s768] sm:$0xf]
    %v770 = vld [vmem:[%s768 + $0x4] sm:$0xf]
    %v771 = vld [vmem:[%s768 + $0x8] sm:$0xf]
    %v772 = vld [vmem:[%s768 + $0xc] sm:$0xf]
    %v773 = vld [vmem:[%s768 + $0x10] sm:$0xf]
    %v774 = vld [vmem:[%s768 + $0x14] sm:$0xf]
    %v775 = vld [vmem:[%s768 + $0x18] sm:$0xf]
    %v776 = vld [vmem:[%s768 + $0x1c] sm:$0xf]
    %v777 = vld [vmem:[%s768 + $0x20] sm:$0xf]
    %v778 = vld [vmem:[%s768 + $0x24] sm:$0xf]
    %v779 = vld [vmem:[%s768 + $0x28] sm:$0xf]
    %v780 = vld [vmem:[%s768 + $0x2c] sm:$0xf]
    %v781 = vld [vmem:[%s768 + $0x30] sm:$0xf]
    %v782 = vld [vmem:[%s768 + $0x34] sm:$0xf]
    %v783 = vld [vmem:[%s768 + $0x38] sm:$0xf]
    %v784 = vld [vmem:[%s768 + $0x3c] sm:$0xf]
    %v785 = vunpack.c.l.bf16 %v769
    %v786 = vunpack.c.l.bf16 %v770
    %v787 = vunpack.c.l.bf16 %v771
    %v788 = vunpack.c.l.bf16 %v772
    %v789 = vunpack.c.l.bf16 %v773
    %v790 = vunpack.c.l.bf16 %v774
    %v791 = vunpack.c.l.bf16 %v775
    %v792 = vunpack.c.l.bf16 %v776
    %v793 = vunpack.c.l.bf16 %v777
    %v794 = vunpack.c.l.bf16 %v778
    %v795 = vunpack.c.l.bf16 %v779
    %v796 = vunpack.c.l.bf16 %v780
    %v797 = vunpack.c.l.bf16 %v781
    %v798 = vunpack.c.l.bf16 %v782
    %v799 = vunpack.c.l.bf16 %v783
    %v800 = vunpack.c.l.bf16 %v784
    %801 = vmatpush.bf16.msra.mxu0 %v767
    %802 = vmatpush.bf16.msra.mxu0 %v766
    %803 = vmatpush.bf16.msra.mxu0 %v765
    %804 = vmatpush.bf16.msra.mxu0 %v764
    %805 = vmatpush.bf16.msra.mxu0 %v763
    %806 = vmatpush.bf16.msra.mxu0 %v762
    %807 = vmatpush.bf16.msra.mxu0 %v761
    %808 = vmatpush.bf16.msra.mxu0 %v760
    %809 = vmatmul.bf16.gmra.mxu0 %v435
    %v810 = vpop.f32.mrf.mxu0
    %v811 = vadd.f32 %v785, %v810
    %v812 = vpop.f32.mrf.mxu0
    %v813 = vadd.f32 %v786, %v812
    %814 = vmatmul.bf16.gmra.mxu0 %v436
    %v815 = vpop.f32.mrf.mxu0
    %v816 = vadd.f32 %v787, %v815
    %v817 = vpop.f32.mrf.mxu0
    %v818 = vadd.f32 %v788, %v817
    %819 = vmatmul.bf16.gmra.mxu0 %v437
    %v820 = vpop.f32.mrf.mxu0
    %v821 = vadd.f32 %v789, %v820
    %v822 = vpop.f32.mrf.mxu0
    %v823 = vadd.f32 %v790, %v822
    %824 = vmatmul.bf16.gmra.mxu0 %v438
    %v825 = vpop.f32.mrf.mxu0
    %v826 = vadd.f32 %v791, %v825
    %v827 = vpop.f32.mrf.mxu0
    %v828 = vadd.f32 %v792, %v827
    %829 = vmatmul.bf16.gmra.mxu0 %v439
    %v830 = vpop.f32.mrf.mxu0
    %v831 = vadd.f32 %v793, %v830
    %v832 = vpop.f32.mrf.mxu0
    %v833 = vadd.f32 %v794, %v832
    %834 = vmatmul.bf16.gmra.mxu0 %v440
    %v835 = vpop.f32.mrf.mxu0
    %v836 = vadd.f32 %v795, %v835
    %v837 = vpop.f32.mrf.mxu0
    %v838 = vadd.f32 %v796, %v837
    %839 = vmatmul.bf16.gmra.mxu0 %v441
    %v840 = vpop.f32.mrf.mxu0
    %v841 = vadd.f32 %v797, %v840
    %v842 = vpop.f32.mrf.mxu0
    %v843 = vadd.f32 %v798, %v842
    %844 = vmatmul.bf16.gmra.mxu0 %v442
    %v845 = vpop.f32.mrf.mxu0
    %v846 = vadd.f32 %v799, %v845
    %v847 = vpop.f32.mrf.mxu0
    %v848 = vadd.f32 %v800, %v847
    %849 = vdwg.mxu0
    %v850 = vadd.f32 %v811, %v813
    %v851 = vadd.f32 %v850, %v816
    %v852 = vadd.f32 %v851, %v818
    %v853 = vadd.f32 %v852, %v821
    %v854 = vadd.f32 %v853, %v823
    %v855 = vadd.f32 %v854, %v826
    %v856 = vadd.f32 %v855, %v828
    %v857 = vadd.f32 %v856, %v831
    %v858 = vadd.f32 %v857, %v833
    %v859 = vadd.f32 %v858, %v836
    %v860 = vadd.f32 %v859, %v838
    %v861 = vadd.f32 %v860, %v841
    %v862 = vadd.f32 %v861, %v843
    %v863 = vadd.f32 %v862, %v846
    %v864 = vadd.f32 %v863, %v848
    %v865 = vrot.slane %v864, 4
    %v866 = vadd.f32 %v864, %v865
    %v867 = vrot.slane %v866, 2
    %v868 = vadd.f32 %v866, %v867
    %v869 = vrot.slane %v868, 1
    %v870 = vadd.f32 %v868, %v869
    %v871 = vmul.f32 %v870, %v527
    %v872 = vmul.f32 %v811, %v811
    %v873 = vmul.f32 %v813, %v813
    %v874 = vmul.f32 %v816, %v816
    %v875 = vmul.f32 %v818, %v818
    %v876 = vmul.f32 %v821, %v821
    %v877 = vmul.f32 %v823, %v823
    %v878 = vmul.f32 %v826, %v826
    %v879 = vmul.f32 %v828, %v828
    %v880 = vmul.f32 %v831, %v831
    %v881 = vmul.f32 %v833, %v833
    %v882 = vmul.f32 %v836, %v836
    %v883 = vmul.f32 %v838, %v838
    %v884 = vmul.f32 %v841, %v841
    %v885 = vmul.f32 %v843, %v843
    %v886 = vmul.f32 %v846, %v846
    %v887 = vmul.f32 %v848, %v848
    %v888 = vadd.f32 %v872, %v873
    %v889 = vadd.f32 %v888, %v874
    %v890 = vadd.f32 %v889, %v875
    %v891 = vadd.f32 %v890, %v876
    %v892 = vadd.f32 %v891, %v877
    %v893 = vadd.f32 %v892, %v878
    %v894 = vadd.f32 %v893, %v879
    %v895 = vadd.f32 %v894, %v880
    %v896 = vadd.f32 %v895, %v881
    %v897 = vadd.f32 %v896, %v882
    %v898 = vadd.f32 %v897, %v883
    %v899 = vadd.f32 %v898, %v884
    %v900 = vadd.f32 %v899, %v885
    %v901 = vadd.f32 %v900, %v886
    %v902 = vadd.f32 %v901, %v887
    %v903 = vrot.slane %v902, 4
    %v904 = vadd.f32 %v902, %v903
    %v905 = vrot.slane %v904, 2
    %v906 = vadd.f32 %v904, %v905
    %v907 = vrot.slane %v906, 1
    %v908 = vadd.f32 %v906, %v907
    %v909 = vmul.f32 %v908, %v527
    %v910 = vmul.f32 %v871, %v871
    %v911 = vsub.f32 %v909, %v910
    %v912 = vmax.f32 %v911, 0.0
    %s913 = scalar_lea.vmem [#allocation10], 8
    %v914 = vld [vmem:[%s913] sm:$0xff]
    %v915 = vadd.f32 %v912, 1e-05
    %v916 = vrsqrt.pop %v915
    %v917 = vmul.f32 %v916, %v915
    %v918 = vmul.f32 %v917, %v916
    %v919 = vmul.f32 0.5, %v918
    %v920 = vsub.f32 1.5, %v919
    %v921 = vmul.f32 %v916, %v920
    %vm922 = vweird.f32 %v915
    %vm923 = vweird.f32 %v916
    %vm924 = vmor %vm922, %vm923
    %v925 = vsel %vm924, %v916, %v921
    %v926 = vmul.f32 %v914, %v925
    %v927 = vmul.f32 %v871, %v926
    %v929 = vrot.slane %v927, 7
    %v931 = vsub.f32 %v914, %v929
    %v932 = vperm.slane %v926, 0
    %v933 = vmul.f32 %v811, %v932
    %v934 = vmul.f32 %v813, %v932
    %v935 = vmul.f32 %v816, %v932
    %v936 = vmul.f32 %v818, %v932
    %v937 = vmul.f32 %v821, %v932
    %v938 = vmul.f32 %v823, %v932
    %v939 = vmul.f32 %v826, %v932
    %v940 = vmul.f32 %v828, %v932
    %v941 = vmul.f32 %v831, %v932
    %v942 = vmul.f32 %v833, %v932
    %v943 = vmul.f32 %v836, %v932
    %v944 = vmul.f32 %v838, %v932
    %v945 = vmul.f32 %v841, %v932
    %v946 = vmul.f32 %v843, %v932
    %v947 = vmul.f32 %v846, %v932
    %v948 = vmul.f32 %v848, %v932
    %v949 = vperm.slane %v931, 1
    %v950 = vadd.f32 %v933, %v949
    %v951 = vadd.f32 %v934, %v949
    %v952 = vadd.f32 %v935, %v949
    %v953 = vadd.f32 %v936, %v949
    %v954 = vadd.f32 %v937, %v949
    %v955 = vadd.f32 %v938, %v949
    %v956 = vadd.f32 %v939, %v949
    %v957 = vadd.f32 %v940, %v949
    %v958 = vadd.f32 %v941, %v949
    %v959 = vadd.f32 %v942, %v949
    %v960 = vadd.f32 %v943, %v949
    %v961 = vadd.f32 %v944, %v949
    %v962 = vadd.f32 %v945, %v949
    %v963 = vadd.f32 %v946, %v949
    %v964 = vadd.f32 %v947, %v949
    %v965 = vadd.f32 %v948, %v949
    %v966 = vmax.f32 %v950, 0.0
    %v967 = vmax.f32 %v951, 0.0
    %v968 = vmax.f32 %v952, 0.0
    %v969 = vmax.f32 %v953, 0.0
    %v970 = vmax.f32 %v954, 0.0
    %v971 = vmax.f32 %v955, 0.0
    %v972 = vmax.f32 %v956, 0.0
    %v973 = vmax.f32 %v957, 0.0
    %v974 = vmax.f32 %v958, 0.0
    %v975 = vmax.f32 %v959, 0.0
    %v976 = vmax.f32 %v960, 0.0
    %v977 = vmax.f32 %v961, 0.0
    %v978 = vmax.f32 %v962, 0.0
    %v979 = vmax.f32 %v963, 0.0
    %v980 = vmax.f32 %v964, 0.0
    %v981 = vmax.f32 %v965, 0.0
    %v982 = vpack.c.bf16 %v967, %v966
    %v983 = vpack.c.bf16 %v969, %v968
    %v984 = vpack.c.bf16 %v971, %v970
    %v985 = vpack.c.bf16 %v973, %v972
    %v986 = vpack.c.bf16 %v975, %v974
    %v987 = vpack.c.bf16 %v977, %v976
    %v988 = vpack.c.bf16 %v979, %v978
    %v989 = vpack.c.bf16 %v981, %v980
    %s990 = scalar_lea.vmem [#allocation8], 128
    %v991 = vld [vmem:[%s990] sm:$0xf]
    %v992 = vld [vmem:[%s990 + $0x4] sm:$0xf]
    %v993 = vld [vmem:[%s990 + $0x8] sm:$0xf]
    %v994 = vld [vmem:[%s990 + $0xc] sm:$0xf]
    %v995 = vld [vmem:[%s990 + $0x10] sm:$0xf]
    %v996 = vld [vmem:[%s990 + $0x14] sm:$0xf]
    %v997 = vld [vmem:[%s990 + $0x18] sm:$0xf]
    %v998 = vld [vmem:[%s990 + $0x1c] sm:$0xf]
    %v999 = vld [vmem:[%s990 + $0x20] sm:$0xf]
    %v1000 = vld [vmem:[%s990 + $0x24] sm:$0xf]
    %v1001 = vld [vmem:[%s990 + $0x28] sm:$0xf]
    %v1002 = vld [vmem:[%s990 + $0x2c] sm:$0xf]
    %v1003 = vld [vmem:[%s990 + $0x30] sm:$0xf]
    %v1004 = vld [vmem:[%s990 + $0x34] sm:$0xf]
    %v1005 = vld [vmem:[%s990 + $0x38] sm:$0xf]
    %v1006 = vld [vmem:[%s990 + $0x3c] sm:$0xf]
    %v1023 = vunpack.c.l.b16 %v991
    %v1024 = vunpack.c.l.b16 %v992
    %v1025 = vunpack.c.l.b16 %v993
    %v1026 = vunpack.c.l.b16 %v994
    %v1027 = vunpack.c.l.b16 %v995
    %v1028 = vunpack.c.l.b16 %v996
    %v1029 = vunpack.c.l.b16 %v997
    %v1030 = vunpack.c.l.b16 %v998
    %v1031 = vunpack.c.l.b16 %v999
    %v1032 = vunpack.c.l.b16 %v1000
    %v1033 = vunpack.c.l.b16 %v1001
    %v1034 = vunpack.c.l.b16 %v1002
    %v1035 = vunpack.c.l.b16 %v1003
    %v1036 = vunpack.c.l.b16 %v1004
    %v1037 = vunpack.c.l.b16 %v1005
    %v1038 = vunpack.c.l.b16 %v1006
    %v1039 = vpack.c.b16 %v1024, %v1023
    %v1040 = vpack.c.b16 %v1026, %v1025
    %v1041 = vpack.c.b16 %v1028, %v1027
    %v1042 = vpack.c.b16 %v1030, %v1029
    %v1043 = vpack.c.b16 %v1032, %v1031
    %v1044 = vpack.c.b16 %v1034, %v1033
    %v1045 = vpack.c.b16 %v1036, %v1035
    %v1046 = vpack.c.b16 %v1038, %v1037
    %1055 = vmatpush.bf16.msra.mxu0 %v1046
    %1056 = vmatpush.bf16.msra.mxu0 %v1045
    %1057 = vmatpush.bf16.msra.mxu0 %v1044
    %1058 = vmatpush.bf16.msra.mxu0 %v1043
    %1059 = vmatpush.bf16.msra.mxu0 %v1042
    %1060 = vmatpush.bf16.msra.mxu0 %v1041
    %1061 = vmatpush.bf16.msra.mxu0 %v1040
    %1062 = vmatpush.bf16.msra.mxu0 %v1039
    %1063 = vmatmul.bf16.gmra.mxu0 %v982
    %v1064 = vpop.f32.mrf.mxu0
    %v1065 = vadd.f32 0.0, %v1064
    %v1066 = vpop.f32.mrf.mxu0
    %v1067 = vadd.f32 0.0, %v1066
    %1068 = vmatmul.bf16.gmra.mxu0 %v983
    %v1069 = vpop.f32.mrf.mxu0
    %v1070 = vadd.f32 0.0, %v1069
    %v1071 = vpop.f32.mrf.mxu0
    %v1072 = vadd.f32 0.0, %v1071
    %1073 = vmatmul.bf16.gmra.mxu0 %v984
    %v1074 = vpop.f32.mrf.mxu0
    %v1075 = vadd.f32 0.0, %v1074
    %v1076 = vpop.f32.mrf.mxu0
    %v1077 = vadd.f32 0.0, %v1076
    %1078 = vmatmul.bf16.gmra.mxu0 %v985
    %v1079 = vpop.f32.mrf.mxu0
    %v1080 = vadd.f32 0.0, %v1079
    %v1081 = vpop.f32.mrf.mxu0
    %v1082 = vadd.f32 0.0, %v1081
    %1083 = vmatmul.bf16.gmra.mxu0 %v986
    %v1084 = vpop.f32.mrf.mxu0
    %v1085 = vadd.f32 0.0, %v1084
    %v1086 = vpop.f32.mrf.mxu0
    %v1087 = vadd.f32 0.0, %v1086
    %1088 = vmatmul.bf16.gmra.mxu0 %v987
    %v1089 = vpop.f32.mrf.mxu0
    %v1090 = vadd.f32 0.0, %v1089
    %v1091 = vpop.f32.mrf.mxu0
    %v1092 = vadd.f32 0.0, %v1091
    %1093 = vmatmul.bf16.gmra.mxu0 %v988
    %v1094 = vpop.f32.mrf.mxu0
    %v1095 = vadd.f32 0.0, %v1094
    %v1096 = vpop.f32.mrf.mxu0
    %v1097 = vadd.f32 0.0, %v1096
    %1098 = vmatmul.bf16.gmra.mxu0 %v989
    %v1099 = vpop.f32.mrf.mxu0
    %v1100 = vadd.f32 0.0, %v1099
    %v1101 = vpop.f32.mrf.mxu0
    %v1102 = vadd.f32 0.0, %v1101
    %1103 = vdwg.mxu0
    %v1104 = vpack.c.bf16 %v1067, %v1065
    %v1105 = vpack.c.bf16 %v1072, %v1070
    %v1106 = vpack.c.bf16 %v1077, %v1075
    %v1107 = vpack.c.bf16 %v1082, %v1080
    %v1108 = vpack.c.bf16 %v1087, %v1085
    %v1109 = vpack.c.bf16 %v1092, %v1090
    %v1110 = vpack.c.bf16 %v1097, %v1095
    %v1111 = vpack.c.bf16 %v1102, %v1100
    %s1112 = scalar_lea.vmem [#allocation7], 128
    %v1113 = vld [vmem:[%s1112] sm:$0xf]
    %v1114 = vld [vmem:[%s1112 + $0x4] sm:$0xf]
    %v1115 = vld [vmem:[%s1112 + $0x8] sm:$0xf]
    %v1116 = vld [vmem:[%s1112 + $0xc] sm:$0xf]
    %v1117 = vld [vmem:[%s1112 + $0x10] sm:$0xf]
    %v1118 = vld [vmem:[%s1112 + $0x14] sm:$0xf]
    %v1119 = vld [vmem:[%s1112 + $0x18] sm:$0xf]
    %v1120 = vld [vmem:[%s1112 + $0x1c] sm:$0xf]
    %v1121 = vld [vmem:[%s1112 + $0x20] sm:$0xf]
    %v1122 = vld [vmem:[%s1112 + $0x24] sm:$0xf]
    %v1123 = vld [vmem:[%s1112 + $0x28] sm:$0xf]
    %v1124 = vld [vmem:[%s1112 + $0x2c] sm:$0xf]
    %v1125 = vld [vmem:[%s1112 + $0x30] sm:$0xf]
    %v1126 = vld [vmem:[%s1112 + $0x34] sm:$0xf]
    %v1127 = vld [vmem:[%s1112 + $0x38] sm:$0xf]
    %v1128 = vld [vmem:[%s1112 + $0x3c] sm:$0xf]
    %v1129 = vunpack.c.l.bf16 %v1113
    %v1130 = vunpack.c.l.bf16 %v1114
    %v1131 = vunpack.c.l.bf16 %v1115
    %v1132 = vunpack.c.l.bf16 %v1116
    %v1133 = vunpack.c.l.bf16 %v1117
    %v1134 = vunpack.c.l.bf16 %v1118
    %v1135 = vunpack.c.l.bf16 %v1119
    %v1136 = vunpack.c.l.bf16 %v1120
    %v1137 = vunpack.c.l.bf16 %v1121
    %v1138 = vunpack.c.l.bf16 %v1122
    %v1139 = vunpack.c.l.bf16 %v1123
    %v1140 = vunpack.c.l.bf16 %v1124
    %v1141 = vunpack.c.l.bf16 %v1125
    %v1142 = vunpack.c.l.bf16 %v1126
    %v1143 = vunpack.c.l.bf16 %v1127
    %v1144 = vunpack.c.l.bf16 %v1128
    %1145 = vmatpush.bf16.msra.mxu0 %v1111
    %1146 = vmatpush.bf16.msra.mxu0 %v1110
    %1147 = vmatpush.bf16.msra.mxu0 %v1109
    %1148 = vmatpush.bf16.msra.mxu0 %v1108
    %1149 = vmatpush.bf16.msra.mxu0 %v1107
    %1150 = vmatpush.bf16.msra.mxu0 %v1106
    %1151 = vmatpush.bf16.msra.mxu0 %v1105
    %1152 = vmatpush.bf16.msra.mxu0 %v1104
    %1153 = vmatmul.bf16.gmra.mxu0 %v435
    %v1154 = vpop.f32.mrf.mxu0
    %v1155 = vadd.f32 %v1129, %v1154
    %v1156 = vpop.f32.mrf.mxu0
    %v1157 = vadd.f32 %v1130, %v1156
    %1158 = vmatmul.bf16.gmra.mxu0 %v436
    %v1159 = vpop.f32.mrf.mxu0
    %v1160 = vadd.f32 %v1131, %v1159
    %v1161 = vpop.f32.mrf.mxu0
    %v1162 = vadd.f32 %v1132, %v1161
    %1163 = vmatmul.bf16.gmra.mxu0 %v437
    %v1164 = vpop.f32.mrf.mxu0
    %v1165 = vadd.f32 %v1133, %v1164
    %v1166 = vpop.f32.mrf.mxu0
    %v1167 = vadd.f32 %v1134, %v1166
    %1168 = vmatmul.bf16.gmra.mxu0 %v438
    %v1169 = vpop.f32.mrf.mxu0
    %v1170 = vadd.f32 %v1135, %v1169
    %v1171 = vpop.f32.mrf.mxu0
    %v1172 = vadd.f32 %v1136, %v1171
    %1173 = vmatmul.bf16.gmra.mxu0 %v439
    %v1174 = vpop.f32.mrf.mxu0
    %v1175 = vadd.f32 %v1137, %v1174
    %v1176 = vpop.f32.mrf.mxu0
    %v1177 = vadd.f32 %v1138, %v1176
    %1178 = vmatmul.bf16.gmra.mxu0 %v440
    %v1179 = vpop.f32.mrf.mxu0
    %v1180 = vadd.f32 %v1139, %v1179
    %v1181 = vpop.f32.mrf.mxu0
    %v1182 = vadd.f32 %v1140, %v1181
    %1183 = vmatmul.bf16.gmra.mxu0 %v441
    %v1184 = vpop.f32.mrf.mxu0
    %v1185 = vadd.f32 %v1141, %v1184
    %v1186 = vpop.f32.mrf.mxu0
    %v1187 = vadd.f32 %v1142, %v1186
    %1188 = vmatmul.bf16.gmra.mxu0 %v442
    %v1189 = vpop.f32.mrf.mxu0
    %v1190 = vadd.f32 %v1143, %v1189
    %v1191 = vpop.f32.mrf.mxu0
    %v1192 = vadd.f32 %v1144, %v1191
    %1193 = vdwg.mxu0
    %v1194 = vadd.f32 %v1155, %v1157
    %v1195 = vadd.f32 %v1194, %v1160
    %v1196 = vadd.f32 %v1195, %v1162
    %v1197 = vadd.f32 %v1196, %v1165
    %v1198 = vadd.f32 %v1197, %v1167
    %v1199 = vadd.f32 %v1198, %v1170
    %v1200 = vadd.f32 %v1199, %v1172
    %v1201 = vadd.f32 %v1200, %v1175
    %v1202 = vadd.f32 %v1201, %v1177
    %v1203 = vadd.f32 %v1202, %v1180
    %v1204 = vadd.f32 %v1203, %v1182
    %v1205 = vadd.f32 %v1204, %v1185
    %v1206 = vadd.f32 %v1205, %v1187
    %v1207 = vadd.f32 %v1206, %v1190
    %v1208 = vadd.f32 %v1207, %v1192
    %v1209 = vrot.slane %v1208, 4
    %v1210 = vadd.f32 %v1208, %v1209
    %v1211 = vrot.slane %v1210, 2
    %v1212 = vadd.f32 %v1210, %v1211
    %v1213 = vrot.slane %v1212, 1
    %v1214 = vadd.f32 %v1212, %v1213
    %v1215 = vmul.f32 %v1214, %v527
    %v1216 = vmul.f32 %v1155, %v1155
    %v1217 = vmul.f32 %v1157, %v1157
    %v1218 = vmul.f32 %v1160, %v1160
    %v1219 = vmul.f32 %v1162, %v1162
    %v1220 = vmul.f32 %v1165, %v1165
    %v1221 = vmul.f32 %v1167, %v1167
    %v1222 = vmul.f32 %v1170, %v1170
    %v1223 = vmul.f32 %v1172, %v1172
    %v1224 = vmul.f32 %v1175, %v1175
    %v1225 = vmul.f32 %v1177, %v1177
    %v1226 = vmul.f32 %v1180, %v1180
    %v1227 = vmul.f32 %v1182, %v1182
    %v1228 = vmul.f32 %v1185, %v1185
    %v1229 = vmul.f32 %v1187, %v1187
    %v1230 = vmul.f32 %v1190, %v1190
    %v1231 = vmul.f32 %v1192, %v1192
    %v1232 = vadd.f32 %v1216, %v1217
    %v1233 = vadd.f32 %v1232, %v1218
    %v1234 = vadd.f32 %v1233, %v1219
    %v1235 = vadd.f32 %v1234, %v1220
    %v1236 = vadd.f32 %v1235, %v1221
    %v1237 = vadd.f32 %v1236, %v1222
    %v1238 = vadd.f32 %v1237, %v1223
    %v1239 = vadd.f32 %v1238, %v1224
    %v1240 = vadd.f32 %v1239, %v1225
    %v1241 = vadd.f32 %v1240, %v1226
    %v1242 = vadd.f32 %v1241, %v1227
    %v1243 = vadd.f32 %v1242, %v1228
    %v1244 = vadd.f32 %v1243, %v1229
    %v1245 = vadd.f32 %v1244, %v1230
    %v1246 = vadd.f32 %v1245, %v1231
    %v1247 = vrot.slane %v1246, 4
    %v1248 = vadd.f32 %v1246, %v1247
    %v1249 = vrot.slane %v1248, 2
    %v1250 = vadd.f32 %v1248, %v1249
    %v1251 = vrot.slane %v1250, 1
    %v1252 = vadd.f32 %v1250, %v1251
    %v1253 = vmul.f32 %v1252, %v527
    %v1254 = vmul.f32 %v1215, %v1215
    %v1255 = vsub.f32 %v1253, %v1254
    %v1256 = vmax.f32 %v1255, 0.0
    %s1257 = scalar_lea.vmem [#allocation10], 16
    %v1258 = vld [vmem:[%s1257] sm:$0xff]
    %v1259 = vadd.f32 %v1256, 1e-05
    %v1260 = vrsqrt.pop %v1259
    %v1261 = vmul.f32 %v1260, %v1259
    %v1262 = vmul.f32 %v1261, %v1260
    %v1263 = vmul.f32 0.5, %v1262
    %v1264 = vsub.f32 1.5, %v1263
    %v1265 = vmul.f32 %v1260, %v1264
    %vm1266 = vweird.f32 %v1259
    %vm1267 = vweird.f32 %v1260
    %vm1268 = vmor %vm1266, %vm1267
    %v1269 = vsel %vm1268, %v1260, %v1265
    %v1270 = vmul.f32 %v1258, %v1269
    %v1271 = vmul.f32 %v1215, %v1270
    %v1273 = vrot.slane %v1271, 7
    %v1275 = vsub.f32 %v1258, %v1273
    %v1276 = vperm.slane %v1270, 0
    %v1277 = vmul.f32 %v1155, %v1276
    %v1278 = vmul.f32 %v1157, %v1276
    %v1279 = vmul.f32 %v1160, %v1276
    %v1280 = vmul.f32 %v1162, %v1276
    %v1281 = vmul.f32 %v1165, %v1276
    %v1282 = vmul.f32 %v1167, %v1276
    %v1283 = vmul.f32 %v1170, %v1276
    %v1284 = vmul.f32 %v1172, %v1276
    %v1285 = vmul.f32 %v1175, %v1276
    %v1286 = vmul.f32 %v1177, %v1276
    %v1287 = vmul.f32 %v1180, %v1276
    %v1288 = vmul.f32 %v1182, %v1276
    %v1289 = vmul.f32 %v1185, %v1276
    %v1290 = vmul.f32 %v1187, %v1276
    %v1291 = vmul.f32 %v1190, %v1276
    %v1292 = vmul.f32 %v1192, %v1276
    %v1293 = vperm.slane %v1275, 1
    %v1294 = vadd.f32 %v1277, %v1293
    %v1295 = vadd.f32 %v1278, %v1293
    %v1296 = vadd.f32 %v1279, %v1293
    %v1297 = vadd.f32 %v1280, %v1293
    %v1298 = vadd.f32 %v1281, %v1293
    %v1299 = vadd.f32 %v1282, %v1293
    %v1300 = vadd.f32 %v1283, %v1293
    %v1301 = vadd.f32 %v1284, %v1293
    %v1302 = vadd.f32 %v1285, %v1293
    %v1303 = vadd.f32 %v1286, %v1293
    %v1304 = vadd.f32 %v1287, %v1293
    %v1305 = vadd.f32 %v1288, %v1293
    %v1306 = vadd.f32 %v1289, %v1293
    %v1307 = vadd.f32 %v1290, %v1293
    %v1308 = vadd.f32 %v1291, %v1293
    %v1309 = vadd.f32 %v1292, %v1293
    %v1310 = vmax.f32 %v1294, 0.0
    %v1311 = vmax.f32 %v1295, 0.0
    %v1312 = vmax.f32 %v1296, 0.0
    %v1313 = vmax.f32 %v1297, 0.0
    %v1314 = vmax.f32 %v1298, 0.0
    %v1315 = vmax.f32 %v1299, 0.0
    %v1316 = vmax.f32 %v1300, 0.0
    %v1317 = vmax.f32 %v1301, 0.0
    %v1318 = vmax.f32 %v1302, 0.0
    %v1319 = vmax.f32 %v1303, 0.0
    %v1320 = vmax.f32 %v1304, 0.0
    %v1321 = vmax.f32 %v1305, 0.0
    %v1322 = vmax.f32 %v1306, 0.0
    %v1323 = vmax.f32 %v1307, 0.0
    %v1324 = vmax.f32 %v1308, 0.0
    %v1325 = vmax.f32 %v1309, 0.0
    %v1326 = vpack.c.bf16 %v1311, %v1310
    %v1327 = vpack.c.bf16 %v1313, %v1312
    %v1328 = vpack.c.bf16 %v1315, %v1314
    %v1329 = vpack.c.bf16 %v1317, %v1316
    %v1330 = vpack.c.bf16 %v1319, %v1318
    %v1331 = vpack.c.bf16 %v1321, %v1320
    %v1332 = vpack.c.bf16 %v1323, %v1322
    %v1333 = vpack.c.bf16 %v1325, %v1324
    %s1334 = scalar_lea.vmem [#allocation8], 192
    %v1335 = vld [vmem:[%s1334] sm:$0xf]
    %v1336 = vld [vmem:[%s1334 + $0x4] sm:$0xf]
    %v1337 = vld [vmem:[%s1334 + $0x8] sm:$0xf]
    %v1338 = vld [vmem:[%s1334 + $0xc] sm:$0xf]
    %v1339 = vld [vmem:[%s1334 + $0x10] sm:$0xf]
    %v1340 = vld [vmem:[%s1334 + $0x14] sm:$0xf]
    %v1341 = vld [vmem:[%s1334 + $0x18] sm:$0xf]
    %v1342 = vld [vmem:[%s1334 + $0x1c] sm:$0xf]
    %v1343 = vld [vmem:[%s1334 + $0x20] sm:$0xf]
    %v1344 = vld [vmem:[%s1334 + $0x24] sm:$0xf]
    %v1345 = vld [vmem:[%s1334 + $0x28] sm:$0xf]
    %v1346 = vld [vmem:[%s1334 + $0x2c] sm:$0xf]
    %v1347 = vld [vmem:[%s1334 + $0x30] sm:$0xf]
    %v1348 = vld [vmem:[%s1334 + $0x34] sm:$0xf]
    %v1349 = vld [vmem:[%s1334 + $0x38] sm:$0xf]
    %v1350 = vld [vmem:[%s1334 + $0x3c] sm:$0xf]
    %v1367 = vunpack.c.l.b16 %v1335
    %v1368 = vunpack.c.l.b16 %v1336
    %v1369 = vunpack.c.l.b16 %v1337
    %v1370 = vunpack.c.l.b16 %v1338
    %v1371 = vunpack.c.l.b16 %v1339
    %v1372 = vunpack.c.l.b16 %v1340
    %v1373 = vunpack.c.l.b16 %v1341
    %v1374 = vunpack.c.l.b16 %v1342
    %v1375 = vunpack.c.l.b16 %v1343
    %v1376 = vunpack.c.l.b16 %v1344
    %v1377 = vunpack.c.l.b16 %v1345
    %v1378 = vunpack.c.l.b16 %v1346
    %v1379 = vunpack.c.l.b16 %v1347
    %v1380 = vunpack.c.l.b16 %v1348
    %v1381 = vunpack.c.l.b16 %v1349
    %v1382 = vunpack.c.l.b16 %v1350
    %v1383 = vpack.c.b16 %v1368, %v1367
    %v1384 = vpack.c.b16 %v1370, %v1369
    %v1385 = vpack.c.b16 %v1372, %v1371
    %v1386 = vpack.c.b16 %v1374, %v1373
    %v1387 = vpack.c.b16 %v1376, %v1375
    %v1388 = vpack.c.b16 %v1378, %v1377
    %v1389 = vpack.c.b16 %v1380, %v1379
    %v1390 = vpack.c.b16 %v1382, %v1381
    %1399 = vmatpush.bf16.msra.mxu0 %v1390
    %1400 = vmatpush.bf16.msra.mxu0 %v1389
    %1401 = vmatpush.bf16.msra.mxu0 %v1388
    %1402 = vmatpush.bf16.msra.mxu0 %v1387
    %1403 = vmatpush.bf16.msra.mxu0 %v1386
    %1404 = vmatpush.bf16.msra.mxu0 %v1385
    %1405 = vmatpush.bf16.msra.mxu0 %v1384
    %1406 = vmatpush.bf16.msra.mxu0 %v1383
    %1407 = vmatmul.bf16.gmra.mxu0 %v1326
    %v1408 = vpop.f32.mrf.mxu0
    %v1409 = vadd.f32 0.0, %v1408
    %v1410 = vpop.f32.mrf.mxu0
    %v1411 = vadd.f32 0.0, %v1410
    %1412 = vmatmul.bf16.gmra.mxu0 %v1327
    %v1413 = vpop.f32.mrf.mxu0
    %v1414 = vadd.f32 0.0, %v1413
    %v1415 = vpop.f32.mrf.mxu0
    %v1416 = vadd.f32 0.0, %v1415
    %1417 = vmatmul.bf16.gmra.mxu0 %v1328
    %v1418 = vpop.f32.mrf.mxu0
    %v1419 = vadd.f32 0.0, %v1418
    %v1420 = vpop.f32.mrf.mxu0
    %v1421 = vadd.f32 0.0, %v1420
    %1422 = vmatmul.bf16.gmra.mxu0 %v1329
    %v1423 = vpop.f32.mrf.mxu0
    %v1424 = vadd.f32 0.0, %v1423
    %v1425 = vpop.f32.mrf.mxu0
    %v1426 = vadd.f32 0.0, %v1425
    %1427 = vmatmul.bf16.gmra.mxu0 %v1330
    %v1428 = vpop.f32.mrf.mxu0
    %v1429 = vadd.f32 0.0, %v1428
    %v1430 = vpop.f32.mrf.mxu0
    %v1431 = vadd.f32 0.0, %v1430
    %1432 = vmatmul.bf16.gmra.mxu0 %v1331
    %v1433 = vpop.f32.mrf.mxu0
    %v1434 = vadd.f32 0.0, %v1433
    %v1435 = vpop.f32.mrf.mxu0
    %v1436 = vadd.f32 0.0, %v1435
    %1437 = vmatmul.bf16.gmra.mxu0 %v1332
    %v1438 = vpop.f32.mrf.mxu0
    %v1439 = vadd.f32 0.0, %v1438
    %v1440 = vpop.f32.mrf.mxu0
    %v1441 = vadd.f32 0.0, %v1440
    %1442 = vmatmul.bf16.gmra.mxu0 %v1333
    %v1443 = vpop.f32.mrf.mxu0
    %v1444 = vadd.f32 0.0, %v1443
    %v1445 = vpop.f32.mrf.mxu0
    %v1446 = vadd.f32 0.0, %v1445
    %1447 = vdwg.mxu0
    %v1448 = vpack.c.bf16 %v1411, %v1409
    %v1449 = vpack.c.bf16 %v1416, %v1414
    %v1450 = vpack.c.bf16 %v1421, %v1419
    %v1451 = vpack.c.bf16 %v1426, %v1424
    %v1452 = vpack.c.bf16 %v1431, %v1429
    %v1453 = vpack.c.bf16 %v1436, %v1434
    %v1454 = vpack.c.bf16 %v1441, %v1439
    %v1455 = vpack.c.bf16 %v1446, %v1444
    %s1456 = scalar_lea.vmem [#allocation7], 192
    %v1457 = vld [vmem:[%s1456] sm:$0xf]
    %v1458 = vld [vmem:[%s1456 + $0x4] sm:$0xf]
    %v1459 = vld [vmem:[%s1456 + $0x8] sm:$0xf]
    %v1460 = vld [vmem:[%s1456 + $0xc] sm:$0xf]
    %v1461 = vld [vmem:[%s1456 + $0x10] sm:$0xf]
    %v1462 = vld [vmem:[%s1456 + $0x14] sm:$0xf]
    %v1463 = vld [vmem:[%s1456 + $0x18] sm:$0xf]
    %v1464 = vld [vmem:[%s1456 + $0x1c] sm:$0xf]
    %v1465 = vld [vmem:[%s1456 + $0x20] sm:$0xf]
    %v1466 = vld [vmem:[%s1456 + $0x24] sm:$0xf]
    %v1467 = vld [vmem:[%s1456 + $0x28] sm:$0xf]
    %v1468 = vld [vmem:[%s1456 + $0x2c] sm:$0xf]
    %v1469 = vld [vmem:[%s1456 + $0x30] sm:$0xf]
    %v1470 = vld [vmem:[%s1456 + $0x34] sm:$0xf]
    %v1471 = vld [vmem:[%s1456 + $0x38] sm:$0xf]
    %v1472 = vld [vmem:[%s1456 + $0x3c] sm:$0xf]
    %v1473 = vunpack.c.l.bf16 %v1457
    %v1474 = vunpack.c.l.bf16 %v1458
    %v1475 = vunpack.c.l.bf16 %v1459
    %v1476 = vunpack.c.l.bf16 %v1460
    %v1477 = vunpack.c.l.bf16 %v1461
    %v1478 = vunpack.c.l.bf16 %v1462
    %v1479 = vunpack.c.l.bf16 %v1463
    %v1480 = vunpack.c.l.bf16 %v1464
    %v1481 = vunpack.c.l.bf16 %v1465
    %v1482 = vunpack.c.l.bf16 %v1466
    %v1483 = vunpack.c.l.bf16 %v1467
    %v1484 = vunpack.c.l.bf16 %v1468
    %v1485 = vunpack.c.l.bf16 %v1469
    %v1486 = vunpack.c.l.bf16 %v1470
    %v1487 = vunpack.c.l.bf16 %v1471
    %v1488 = vunpack.c.l.bf16 %v1472
    %1489 = vmatpush.bf16.msra.mxu0 %v1455
    %1490 = vmatpush.bf16.msra.mxu0 %v1454
    %1491 = vmatpush.bf16.msra.mxu0 %v1453
    %1492 = vmatpush.bf16.msra.mxu0 %v1452
    %1493 = vmatpush.bf16.msra.mxu0 %v1451
    %1494 = vmatpush.bf16.msra.mxu0 %v1450
    %1495 = vmatpush.bf16.msra.mxu0 %v1449
    %1496 = vmatpush.bf16.msra.mxu0 %v1448
    %1497 = vmatmul.bf16.gmra.mxu0 %v435
    %v1498 = vpop.f32.mrf.mxu0
    %v1499 = vadd.f32 %v1473, %v1498
    %v1500 = vpop.f32.mrf.mxu0
    %v1501 = vadd.f32 %v1474, %v1500
    %1502 = vmatmul.bf16.gmra.mxu0 %v436
    %v1503 = vpop.f32.mrf.mxu0
    %v1504 = vadd.f32 %v1475, %v1503
    %v1505 = vpop.f32.mrf.mxu0
    %v1506 = vadd.f32 %v1476, %v1505
    %1507 = vmatmul.bf16.gmra.mxu0 %v437
    %v1508 = vpop.f32.mrf.mxu0
    %v1509 = vadd.f32 %v1477, %v1508
    %v1510 = vpop.f32.mrf.mxu0
    %v1511 = vadd.f32 %v1478, %v1510
    %1512 = vmatmul.bf16.gmra.mxu0 %v438
    %v1513 = vpop.f32.mrf.mxu0
    %v1514 = vadd.f32 %v1479, %v1513
    %v1515 = vpop.f32.mrf.mxu0
    %v1516 = vadd.f32 %v1480, %v1515
    %1517 = vmatmul.bf16.gmra.mxu0 %v439
    %v1518 = vpop.f32.mrf.mxu0
    %v1519 = vadd.f32 %v1481, %v1518
    %v1520 = vpop.f32.mrf.mxu0
    %v1521 = vadd.f32 %v1482, %v1520
    %1522 = vmatmul.bf16.gmra.mxu0 %v440
    %v1523 = vpop.f32.mrf.mxu0
    %v1524 = vadd.f32 %v1483, %v1523
    %v1525 = vpop.f32.mrf.mxu0
    %v1526 = vadd.f32 %v1484, %v1525
    %1527 = vmatmul.bf16.gmra.mxu0 %v441
    %v1528 = vpop.f32.mrf.mxu0
    %v1529 = vadd.f32 %v1485, %v1528
    %v1530 = vpop.f32.mrf.mxu0
    %v1531 = vadd.f32 %v1486, %v1530
    %1532 = vmatmul.bf16.gmra.mxu0 %v442
    %v1533 = vpop.f32.mrf.mxu0
    %v1534 = vadd.f32 %v1487, %v1533
    %v1535 = vpop.f32.mrf.mxu0
    %v1536 = vadd.f32 %v1488, %v1535
    %1537 = vdwg.mxu0
    %v1538 = vadd.f32 %v1499, %v1501
    %v1539 = vadd.f32 %v1538, %v1504
    %v1540 = vadd.f32 %v1539, %v1506
    %v1541 = vadd.f32 %v1540, %v1509
    %v1542 = vadd.f32 %v1541, %v1511
    %v1543 = vadd.f32 %v1542, %v1514
    %v1544 = vadd.f32 %v1543, %v1516
    %v1545 = vadd.f32 %v1544, %v1519
    %v1546 = vadd.f32 %v1545, %v1521
    %v1547 = vadd.f32 %v1546, %v1524
    %v1548 = vadd.f32 %v1547, %v1526
    %v1549 = vadd.f32 %v1548, %v1529
    %v1550 = vadd.f32 %v1549, %v1531
    %v1551 = vadd.f32 %v1550, %v1534
    %v1552 = vadd.f32 %v1551, %v1536
    %v1553 = vrot.slane %v1552, 4
    %v1554 = vadd.f32 %v1552, %v1553
    %v1555 = vrot.slane %v1554, 2
    %v1556 = vadd.f32 %v1554, %v1555
    %v1557 = vrot.slane %v1556, 1
    %v1558 = vadd.f32 %v1556, %v1557
    %v1559 = vmul.f32 %v1558, %v527
    %v1560 = vmul.f32 %v1499, %v1499
    %v1561 = vmul.f32 %v1501, %v1501
    %v1562 = vmul.f32 %v1504, %v1504
    %v1563 = vmul.f32 %v1506, %v1506
    %v1564 = vmul.f32 %v1509, %v1509
    %v1565 = vmul.f32 %v1511, %v1511
    %v1566 = vmul.f32 %v1514, %v1514
    %v1567 = vmul.f32 %v1516, %v1516
    %v1568 = vmul.f32 %v1519, %v1519
    %v1569 = vmul.f32 %v1521, %v1521
    %v1570 = vmul.f32 %v1524, %v1524
    %v1571 = vmul.f32 %v1526, %v1526
    %v1572 = vmul.f32 %v1529, %v1529
    %v1573 = vmul.f32 %v1531, %v1531
    %v1574 = vmul.f32 %v1534, %v1534
    %v1575 = vmul.f32 %v1536, %v1536
    %v1576 = vadd.f32 %v1560, %v1561
    %v1577 = vadd.f32 %v1576, %v1562
    %v1578 = vadd.f32 %v1577, %v1563
    %v1579 = vadd.f32 %v1578, %v1564
    %v1580 = vadd.f32 %v1579, %v1565
    %v1581 = vadd.f32 %v1580, %v1566
    %v1582 = vadd.f32 %v1581, %v1567
    %v1583 = vadd.f32 %v1582, %v1568
    %v1584 = vadd.f32 %v1583, %v1569
    %v1585 = vadd.f32 %v1584, %v1570
    %v1586 = vadd.f32 %v1585, %v1571
    %v1587 = vadd.f32 %v1586, %v1572
    %v1588 = vadd.f32 %v1587, %v1573
    %v1589 = vadd.f32 %v1588, %v1574
    %v1590 = vadd.f32 %v1589, %v1575
    %v1591 = vrot.slane %v1590, 4
    %v1592 = vadd.f32 %v1590, %v1591
    %v1593 = vrot.slane %v1592, 2
    %v1594 = vadd.f32 %v1592, %v1593
    %v1595 = vrot.slane %v1594, 1
    %v1596 = vadd.f32 %v1594, %v1595
    %v1597 = vmul.f32 %v1596, %v527
    %v1598 = vmul.f32 %v1559, %v1559
    %v1599 = vsub.f32 %v1597, %v1598
    %v1600 = vmax.f32 %v1599, 0.0
    %s1601 = scalar_lea.vmem [#allocation10], 24
    %v1602 = vld [vmem:[%s1601] sm:$0xff]
    %v1603 = vadd.f32 %v1600, 1e-05
    %v1604 = vrsqrt.pop %v1603
    %v1605 = vmul.f32 %v1604, %v1603
    %v1606 = vmul.f32 %v1605, %v1604
    %v1607 = vmul.f32 0.5, %v1606
    %v1608 = vsub.f32 1.5, %v1607
    %v1609 = vmul.f32 %v1604, %v1608
    %vm1610 = vweird.f32 %v1603
    %vm1611 = vweird.f32 %v1604
    %vm1612 = vmor %vm1610, %vm1611
    %v1613 = vsel %vm1612, %v1604, %v1609
    %v1614 = vmul.f32 %v1602, %v1613
    %v1615 = vmul.f32 %v1559, %v1614
    %v1617 = vrot.slane %v1615, 7
    %v1619 = vsub.f32 %v1602, %v1617
    %v1620 = vperm.slane %v1614, 0
    %v1621 = vmul.f32 %v1499, %v1620
    %v1622 = vmul.f32 %v1501, %v1620
    %v1623 = vmul.f32 %v1504, %v1620
    %v1624 = vmul.f32 %v1506, %v1620
    %v1625 = vmul.f32 %v1509, %v1620
    %v1626 = vmul.f32 %v1511, %v1620
    %v1627 = vmul.f32 %v1514, %v1620
    %v1628 = vmul.f32 %v1516, %v1620
    %v1629 = vmul.f32 %v1519, %v1620
    %v1630 = vmul.f32 %v1521, %v1620
    %v1631 = vmul.f32 %v1524, %v1620
    %v1632 = vmul.f32 %v1526, %v1620
    %v1633 = vmul.f32 %v1529, %v1620
    %v1634 = vmul.f32 %v1531, %v1620
    %v1635 = vmul.f32 %v1534, %v1620
    %v1636 = vmul.f32 %v1536, %v1620
    %v1637 = vperm.slane %v1619, 1
    %v1638 = vadd.f32 %v1621, %v1637
    %v1639 = vadd.f32 %v1622, %v1637
    %v1640 = vadd.f32 %v1623, %v1637
    %v1641 = vadd.f32 %v1624, %v1637
    %v1642 = vadd.f32 %v1625, %v1637
    %v1643 = vadd.f32 %v1626, %v1637
    %v1644 = vadd.f32 %v1627, %v1637
    %v1645 = vadd.f32 %v1628, %v1637
    %v1646 = vadd.f32 %v1629, %v1637
    %v1647 = vadd.f32 %v1630, %v1637
    %v1648 = vadd.f32 %v1631, %v1637
    %v1649 = vadd.f32 %v1632, %v1637
    %v1650 = vadd.f32 %v1633, %v1637
    %v1651 = vadd.f32 %v1634, %v1637
    %v1652 = vadd.f32 %v1635, %v1637
    %v1653 = vadd.f32 %v1636, %v1637
    %v1654 = vmax.f32 %v1638, 0.0
    %v1655 = vmax.f32 %v1639, 0.0
    %v1656 = vmax.f32 %v1640, 0.0
    %v1657 = vmax.f32 %v1641, 0.0
    %v1658 = vmax.f32 %v1642, 0.0
    %v1659 = vmax.f32 %v1643, 0.0
    %v1660 = vmax.f32 %v1644, 0.0
    %v1661 = vmax.f32 %v1645, 0.0
    %v1662 = vmax.f32 %v1646, 0.0
    %v1663 = vmax.f32 %v1647, 0.0
    %v1664 = vmax.f32 %v1648, 0.0
    %v1665 = vmax.f32 %v1649, 0.0
    %v1666 = vmax.f32 %v1650, 0.0
    %v1667 = vmax.f32 %v1651, 0.0
    %v1668 = vmax.f32 %v1652, 0.0
    %v1669 = vmax.f32 %v1653, 0.0
    %v1670 = vpack.c.bf16 %v1655, %v1654
    %v1671 = vpack.c.bf16 %v1657, %v1656
    %v1672 = vpack.c.bf16 %v1659, %v1658
    %v1673 = vpack.c.bf16 %v1661, %v1660
    %v1674 = vpack.c.bf16 %v1663, %v1662
    %v1675 = vpack.c.bf16 %v1665, %v1664
    %v1676 = vpack.c.bf16 %v1667, %v1666
    %v1677 = vpack.c.bf16 %v1669, %v1668
    %s1678 = scalar_lea.vmem [#allocation8], 256
    %v1679 = vld [vmem:[%s1678] sm:$0xf]
    %v1680 = vld [vmem:[%s1678 + $0x4] sm:$0xf]
    %v1681 = vld [vmem:[%s1678 + $0x8] sm:$0xf]
    %v1682 = vld [vmem:[%s1678 + $0xc] sm:$0xf]
    %v1683 = vld [vmem:[%s1678 + $0x10] sm:$0xf]
    %v1684 = vld [vmem:[%s1678 + $0x14] sm:$0xf]
    %v1685 = vld [vmem:[%s1678 + $0x18] sm:$0xf]
    %v1686 = vld [vmem:[%s1678 + $0x1c] sm:$0xf]
    %v1687 = vld [vmem:[%s1678 + $0x20] sm:$0xf]
    %v1688 = vld [vmem:[%s1678 + $0x24] sm:$0xf]
    %v1689 = vld [vmem:[%s1678 + $0x28] sm:$0xf]
    %v1690 = vld [vmem:[%s1678 + $0x2c] sm:$0xf]
    %v1691 = vld [vmem:[%s1678 + $0x30] sm:$0xf]
    %v1692 = vld [vmem:[%s1678 + $0x34] sm:$0xf]
    %v1693 = vld [vmem:[%s1678 + $0x38] sm:$0xf]
    %v1694 = vld [vmem:[%s1678 + $0x3c] sm:$0xf]
    %v1711 = vunpack.c.l.b16 %v1679
    %v1712 = vunpack.c.l.b16 %v1680
    %v1713 = vunpack.c.l.b16 %v1681
    %v1714 = vunpack.c.l.b16 %v1682
    %v1715 = vunpack.c.l.b16 %v1683
    %v1716 = vunpack.c.l.b16 %v1684
    %v1717 = vunpack.c.l.b16 %v1685
    %v1718 = vunpack.c.l.b16 %v1686
    %v1719 = vunpack.c.l.b16 %v1687
    %v1720 = vunpack.c.l.b16 %v1688
    %v1721 = vunpack.c.l.b16 %v1689
    %v1722 = vunpack.c.l.b16 %v1690
    %v1723 = vunpack.c.l.b16 %v1691
    %v1724 = vunpack.c.l.b16 %v1692
    %v1725 = vunpack.c.l.b16 %v1693
    %v1726 = vunpack.c.l.b16 %v1694
    %v1727 = vpack.c.b16 %v1712, %v1711
    %v1728 = vpack.c.b16 %v1714, %v1713
    %v1729 = vpack.c.b16 %v1716, %v1715
    %v1730 = vpack.c.b16 %v1718, %v1717
    %v1731 = vpack.c.b16 %v1720, %v1719
    %v1732 = vpack.c.b16 %v1722, %v1721
    %v1733 = vpack.c.b16 %v1724, %v1723
    %v1734 = vpack.c.b16 %v1726, %v1725
    %1743 = vmatpush.bf16.msra.mxu0 %v1734
    %1744 = vmatpush.bf16.msra.mxu0 %v1733
    %1745 = vmatpush.bf16.msra.mxu0 %v1732
    %1746 = vmatpush.bf16.msra.mxu0 %v1731
    %1747 = vmatpush.bf16.msra.mxu0 %v1730
    %1748 = vmatpush.bf16.msra.mxu0 %v1729
    %1749 = vmatpush.bf16.msra.mxu0 %v1728
    %1750 = vmatpush.bf16.msra.mxu0 %v1727
    %1751 = vmatmul.bf16.gmra.mxu0 %v1670
    %v1752 = vpop.f32.mrf.mxu0
    %v1753 = vadd.f32 0.0, %v1752
    %v1754 = vpop.f32.mrf.mxu0
    %v1755 = vadd.f32 0.0, %v1754
    %1756 = vmatmul.bf16.gmra.mxu0 %v1671
    %v1757 = vpop.f32.mrf.mxu0
    %v1758 = vadd.f32 0.0, %v1757
    %v1759 = vpop.f32.mrf.mxu0
    %v1760 = vadd.f32 0.0, %v1759
    %1761 = vmatmul.bf16.gmra.mxu0 %v1672
    %v1762 = vpop.f32.mrf.mxu0
    %v1763 = vadd.f32 0.0, %v1762
    %v1764 = vpop.f32.mrf.mxu0
    %v1765 = vadd.f32 0.0, %v1764
    %1766 = vmatmul.bf16.gmra.mxu0 %v1673
    %v1767 = vpop.f32.mrf.mxu0
    %v1768 = vadd.f32 0.0, %v1767
    %v1769 = vpop.f32.mrf.mxu0
    %v1770 = vadd.f32 0.0, %v1769
    %1771 = vmatmul.bf16.gmra.mxu0 %v1674
    %v1772 = vpop.f32.mrf.mxu0
    %v1773 = vadd.f32 0.0, %v1772
    %v1774 = vpop.f32.mrf.mxu0
    %v1775 = vadd.f32 0.0, %v1774
    %1776 = vmatmul.bf16.gmra.mxu0 %v1675
    %v1777 = vpop.f32.mrf.mxu0
    %v1778 = vadd.f32 0.0, %v1777
    %v1779 = vpop.f32.mrf.mxu0
    %v1780 = vadd.f32 0.0, %v1779
    %1781 = vmatmul.bf16.gmra.mxu0 %v1676
    %v1782 = vpop.f32.mrf.mxu0
    %v1783 = vadd.f32 0.0, %v1782
    %v1784 = vpop.f32.mrf.mxu0
    %v1785 = vadd.f32 0.0, %v1784
    %1786 = vmatmul.bf16.gmra.mxu0 %v1677
    %v1787 = vpop.f32.mrf.mxu0
    %v1788 = vadd.f32 0.0, %v1787
    %v1789 = vpop.f32.mrf.mxu0
    %v1790 = vadd.f32 0.0, %v1789
    %1791 = vdwg.mxu0
    %v1792 = vpack.c.bf16 %v1755, %v1753
    %v1793 = vpack.c.bf16 %v1760, %v1758
    %v1794 = vpack.c.bf16 %v1765, %v1763
    %v1795 = vpack.c.bf16 %v1770, %v1768
    %v1796 = vpack.c.bf16 %v1775, %v1773
    %v1797 = vpack.c.bf16 %v1780, %v1778
    %v1798 = vpack.c.bf16 %v1785, %v1783
    %v1799 = vpack.c.bf16 %v1790, %v1788
    %s1800 = scalar_lea.vmem [#allocation7], 256
    %v1801 = vld [vmem:[%s1800] sm:$0xf]
    %v1802 = vld [vmem:[%s1800 + $0x4] sm:$0xf]
    %v1803 = vld [vmem:[%s1800 + $0x8] sm:$0xf]
    %v1804 = vld [vmem:[%s1800 + $0xc] sm:$0xf]
    %v1805 = vld [vmem:[%s1800 + $0x10] sm:$0xf]
    %v1806 = vld [vmem:[%s1800 + $0x14] sm:$0xf]
    %v1807 = vld [vmem:[%s1800 + $0x18] sm:$0xf]
    %v1808 = vld [vmem:[%s1800 + $0x1c] sm:$0xf]
    %v1809 = vld [vmem:[%s1800 + $0x20] sm:$0xf]
    %v1810 = vld [vmem:[%s1800 + $0x24] sm:$0xf]
    %v1811 = vld [vmem:[%s1800 + $0x28] sm:$0xf]
    %v1812 = vld [vmem:[%s1800 + $0x2c] sm:$0xf]
    %v1813 = vld [vmem:[%s1800 + $0x30] sm:$0xf]
    %v1814 = vld [vmem:[%s1800 + $0x34] sm:$0xf]
    %v1815 = vld [vmem:[%s1800 + $0x38] sm:$0xf]
    %v1816 = vld [vmem:[%s1800 + $0x3c] sm:$0xf]
    %v1817 = vunpack.c.l.bf16 %v1801
    %v1818 = vunpack.c.l.bf16 %v1802
    %v1819 = vunpack.c.l.bf16 %v1803
    %v1820 = vunpack.c.l.bf16 %v1804
    %v1821 = vunpack.c.l.bf16 %v1805
    %v1822 = vunpack.c.l.bf16 %v1806
    %v1823 = vunpack.c.l.bf16 %v1807
    %v1824 = vunpack.c.l.bf16 %v1808
    %v1825 = vunpack.c.l.bf16 %v1809
    %v1826 = vunpack.c.l.bf16 %v1810
    %v1827 = vunpack.c.l.bf16 %v1811
    %v1828 = vunpack.c.l.bf16 %v1812
    %v1829 = vunpack.c.l.bf16 %v1813
    %v1830 = vunpack.c.l.bf16 %v1814
    %v1831 = vunpack.c.l.bf16 %v1815
    %v1832 = vunpack.c.l.bf16 %v1816
    %1833 = vmatpush.bf16.msra.mxu0 %v1799
    %1834 = vmatpush.bf16.msra.mxu0 %v1798
    %1835 = vmatpush.bf16.msra.mxu0 %v1797
    %1836 = vmatpush.bf16.msra.mxu0 %v1796
    %1837 = vmatpush.bf16.msra.mxu0 %v1795
    %1838 = vmatpush.bf16.msra.mxu0 %v1794
    %1839 = vmatpush.bf16.msra.mxu0 %v1793
    %1840 = vmatpush.bf16.msra.mxu0 %v1792
    %1841 = vmatmul.bf16.gmra.mxu0 %v435
    %v1842 = vpop.f32.mrf.mxu0
    %v1843 = vadd.f32 %v1817, %v1842
    %v1844 = vpop.f32.mrf.mxu0
    %v1845 = vadd.f32 %v1818, %v1844
    %1846 = vmatmul.bf16.gmra.mxu0 %v436
    %v1847 = vpop.f32.mrf.mxu0
    %v1848 = vadd.f32 %v1819, %v1847
    %v1849 = vpop.f32.mrf.mxu0
    %v1850 = vadd.f32 %v1820, %v1849
    %1851 = vmatmul.bf16.gmra.mxu0 %v437
    %v1852 = vpop.f32.mrf.mxu0
    %v1853 = vadd.f32 %v1821, %v1852
    %v1854 = vpop.f32.mrf.mxu0
    %v1855 = vadd.f32 %v1822, %v1854
    %1856 = vmatmul.bf16.gmra.mxu0 %v438
    %v1857 = vpop.f32.mrf.mxu0
    %v1858 = vadd.f32 %v1823, %v1857
    %v1859 = vpop.f32.mrf.mxu0
    %v1860 = vadd.f32 %v1824, %v1859
    %1861 = vmatmul.bf16.gmra.mxu0 %v439
    %v1862 = vpop.f32.mrf.mxu0
    %v1863 = vadd.f32 %v1825, %v1862
    %v1864 = vpop.f32.mrf.mxu0
    %v1865 = vadd.f32 %v1826, %v1864
    %1866 = vmatmul.bf16.gmra.mxu0 %v440
    %v1867 = vpop.f32.mrf.mxu0
    %v1868 = vadd.f32 %v1827, %v1867
    %v1869 = vpop.f32.mrf.mxu0
    %v1870 = vadd.f32 %v1828, %v1869
    %1871 = vmatmul.bf16.gmra.mxu0 %v441
    %v1872 = vpop.f32.mrf.mxu0
    %v1873 = vadd.f32 %v1829, %v1872
    %v1874 = vpop.f32.mrf.mxu0
    %v1875 = vadd.f32 %v1830, %v1874
    %1876 = vmatmul.bf16.gmra.mxu0 %v442
    %v1877 = vpop.f32.mrf.mxu0
    %v1878 = vadd.f32 %v1831, %v1877
    %v1879 = vpop.f32.mrf.mxu0
    %v1880 = vadd.f32 %v1832, %v1879
    %1881 = vdwg.mxu0
    %v1882 = vadd.f32 %v1843, %v1845
    %v1883 = vadd.f32 %v1882, %v1848
    %v1884 = vadd.f32 %v1883, %v1850
    %v1885 = vadd.f32 %v1884, %v1853
    %v1886 = vadd.f32 %v1885, %v1855
    %v1887 = vadd.f32 %v1886, %v1858
    %v1888 = vadd.f32 %v1887, %v1860
    %v1889 = vadd.f32 %v1888, %v1863
    %v1890 = vadd.f32 %v1889, %v1865
    %v1891 = vadd.f32 %v1890, %v1868
    %v1892 = vadd.f32 %v1891, %v1870
    %v1893 = vadd.f32 %v1892, %v1873
    %v1894 = vadd.f32 %v1893, %v1875
    %v1895 = vadd.f32 %v1894, %v1878
    %v1896 = vadd.f32 %v1895, %v1880
    %v1897 = vrot.slane %v1896, 4
    %v1898 = vadd.f32 %v1896, %v1897
    %v1899 = vrot.slane %v1898, 2
    %v1900 = vadd.f32 %v1898, %v1899
    %v1901 = vrot.slane %v1900, 1
    %v1902 = vadd.f32 %v1900, %v1901
    %v1903 = vmul.f32 %v1902, %v527
    %v1904 = vmul.f32 %v1843, %v1843
    %v1905 = vmul.f32 %v1845, %v1845
    %v1906 = vmul.f32 %v1848, %v1848
    %v1907 = vmul.f32 %v1850, %v1850
    %v1908 = vmul.f32 %v1853, %v1853
    %v1909 = vmul.f32 %v1855, %v1855
    %v1910 = vmul.f32 %v1858, %v1858
    %v1911 = vmul.f32 %v1860, %v1860
    %v1912 = vmul.f32 %v1863, %v1863
    %v1913 = vmul.f32 %v1865, %v1865
    %v1914 = vmul.f32 %v1868, %v1868
    %v1915 = vmul.f32 %v1870, %v1870
    %v1916 = vmul.f32 %v1873, %v1873
    %v1917 = vmul.f32 %v1875, %v1875
    %v1918 = vmul.f32 %v1878, %v1878
    %v1919 = vmul.f32 %v1880, %v1880
    %v1920 = vadd.f32 %v1904, %v1905
    %v1921 = vadd.f32 %v1920, %v1906
    %v1922 = vadd.f32 %v1921, %v1907
    %v1923 = vadd.f32 %v1922, %v1908
    %v1924 = vadd.f32 %v1923, %v1909
    %v1925 = vadd.f32 %v1924, %v1910
    %v1926 = vadd.f32 %v1925, %v1911
    %v1927 = vadd.f32 %v1926, %v1912
    %v1928 = vadd.f32 %v1927, %v1913
    %v1929 = vadd.f32 %v1928, %v1914
    %v1930 = vadd.f32 %v1929, %v1915
    %v1931 = vadd.f32 %v1930, %v1916
    %v1932 = vadd.f32 %v1931, %v1917
    %v1933 = vadd.f32 %v1932, %v1918
    %v1934 = vadd.f32 %v1933, %v1919
    %v1935 = vrot.slane %v1934, 4
    %v1936 = vadd.f32 %v1934, %v1935
    %v1937 = vrot.slane %v1936, 2
    %v1938 = vadd.f32 %v1936, %v1937
    %v1939 = vrot.slane %v1938, 1
    %v1940 = vadd.f32 %v1938, %v1939
    %v1941 = vmul.f32 %v1940, %v527
    %v1942 = vmul.f32 %v1903, %v1903
    %v1943 = vsub.f32 %v1941, %v1942
    %v1944 = vmax.f32 %v1943, 0.0
    %s1945 = scalar_lea.vmem [#allocation10], 32
    %v1946 = vld [vmem:[%s1945] sm:$0xff]
    %v1947 = vadd.f32 %v1944, 1e-05
    %v1948 = vrsqrt.pop %v1947
    %v1949 = vmul.f32 %v1948, %v1947
    %v1950 = vmul.f32 %v1949, %v1948
    %v1951 = vmul.f32 0.5, %v1950
    %v1952 = vsub.f32 1.5, %v1951
    %v1953 = vmul.f32 %v1948, %v1952
    %vm1954 = vweird.f32 %v1947
    %vm1955 = vweird.f32 %v1948
    %vm1956 = vmor %vm1954, %vm1955
    %v1957 = vsel %vm1956, %v1948, %v1953
    %v1958 = vmul.f32 %v1946, %v1957
    %v1959 = vmul.f32 %v1903, %v1958
    %v1961 = vrot.slane %v1959, 7
    %v1963 = vsub.f32 %v1946, %v1961
    %v1964 = vperm.slane %v1958, 0
    %v1965 = vmul.f32 %v1843, %v1964
    %v1966 = vmul.f32 %v1845, %v1964
    %v1967 = vmul.f32 %v1848, %v1964
    %v1968 = vmul.f32 %v1850, %v1964
    %v1969 = vmul.f32 %v1853, %v1964
    %v1970 = vmul.f32 %v1855, %v1964
    %v1971 = vmul.f32 %v1858, %v1964
    %v1972 = vmul.f32 %v1860, %v1964
    %v1973 = vmul.f32 %v1863, %v1964
    %v1974 = vmul.f32 %v1865, %v1964
    %v1975 = vmul.f32 %v1868, %v1964
    %v1976 = vmul.f32 %v1870, %v1964
    %v1977 = vmul.f32 %v1873, %v1964
    %v1978 = vmul.f32 %v1875, %v1964
    %v1979 = vmul.f32 %v1878, %v1964
    %v1980 = vmul.f32 %v1880, %v1964
    %v1981 = vperm.slane %v1963, 1
    %v1982 = vadd.f32 %v1965, %v1981
    %v1983 = vadd.f32 %v1966, %v1981
    %v1984 = vadd.f32 %v1967, %v1981
    %v1985 = vadd.f32 %v1968, %v1981
    %v1986 = vadd.f32 %v1969, %v1981
    %v1987 = vadd.f32 %v1970, %v1981
    %v1988 = vadd.f32 %v1971, %v1981
    %v1989 = vadd.f32 %v1972, %v1981
    %v1990 = vadd.f32 %v1973, %v1981
    %v1991 = vadd.f32 %v1974, %v1981
    %v1992 = vadd.f32 %v1975, %v1981
    %v1993 = vadd.f32 %v1976, %v1981
    %v1994 = vadd.f32 %v1977, %v1981
    %v1995 = vadd.f32 %v1978, %v1981
    %v1996 = vadd.f32 %v1979, %v1981
    %v1997 = vadd.f32 %v1980, %v1981
    %v1998 = vpack.c.bf16 %v1983, %v1982
    %v1999 = vpack.c.bf16 %v1985, %v1984
    %v2000 = vpack.c.bf16 %v1987, %v1986
    %v2001 = vpack.c.bf16 %v1989, %v1988
    %v2002 = vpack.c.bf16 %v1991, %v1990
    %v2003 = vpack.c.bf16 %v1993, %v1992
    %v2004 = vpack.c.bf16 %v1995, %v1994
    %v2005 = vpack.c.bf16 %v1997, %v1996
    %v2006 = vld [vmem:[%s5] sm:$0xf]
    %2007 = vmatpush.bf16.msra.mxu0 %v2005
    %2008 = vmatpush.bf16.msra.mxu0 %v2004
    %2009 = vmatpush.bf16.msra.mxu0 %v2003
    %2010 = vmatpush.bf16.msra.mxu0 %v2002
    %2011 = vmatpush.bf16.msra.mxu0 %v2001
    %2012 = vmatpush.bf16.msra.mxu0 %v2000
    %2013 = vmatpush.bf16.msra.mxu0 %v1999
    %2014 = vmatpush.bf16.msra.mxu0 %v1998
    %2015 = vmatmul.bf16.gmra.mxu0 %v2006
    %v2016 = vpop.f32.mrf.mxu0
    %v2017 = vadd.f32 0.0, %v2016
    %v2018 = vpop.f32.mrf.mxu0
    %2019 = vdwg.mxu0
    %v2020 = vpack.c.bf16 %v2017, %v2017
    %v2021 = vld [vmem:[#allocation11] sm:$0xff]
    %v2022 = vld [vmem:[#allocation11 + $0x8] sm:$0xff]
    %v2023 = vld [vmem:[#allocation11 + $0x10] sm:$0xff]
    %v2024 = vld [vmem:[#allocation11 + $0x18] sm:$0xff]
    %v2025 = vld [vmem:[#allocation11 + $0x20] sm:$0xff]
    %v2026 = vld [vmem:[#allocation11 + $0x28] sm:$0xff]
    %v2027 = vld [vmem:[#allocation11 + $0x30] sm:$0xff]
    %v2028 = vld [vmem:[#allocation11 + $0x38] sm:$0xff]
    %v2029 = vld [vmem:[#allocation11 + $0x40] sm:$0xff]
    %v2030 = vld [vmem:[#allocation11 + $0x48] sm:$0xff]
    %v2031 = vld [vmem:[#allocation11 + $0x50] sm:$0xff]
    %v2032 = vld [vmem:[#allocation11 + $0x58] sm:$0xff]
    %v2033 = vld [vmem:[#allocation11 + $0x60] sm:$0xff]
    %v2034 = vld [vmem:[#allocation11 + $0x68] sm:$0xff]
    %v2035 = vld [vmem:[#allocation11 + $0x70] sm:$0xff]
    %v2036 = vld [vmem:[#allocation11 + $0x78] sm:$0xff]
    %v2037 = vld [vmem:[%s7] sm:$0x3]
    %v2039 = vperm.slane %v2037, 0
    %v2040 = vperm.slane %v2037, 1
    %v2059 = vunpack.c.l.b16 %v2021
    %v2060 = vunpack.c.h.b16 %v2021
    %v2061 = vunpack.c.l.b16 %v2022
    %v2062 = vunpack.c.h.b16 %v2022
    %v2063 = vunpack.c.l.b16 %v2023
    %v2064 = vunpack.c.h.b16 %v2023
    %v2065 = vunpack.c.l.b16 %v2024
    %v2066 = vunpack.c.h.b16 %v2024
    %v2067 = vunpack.c.l.b16 %v2025
    %v2068 = vunpack.c.h.b16 %v2025
    %v2069 = vunpack.c.l.b16 %v2026
    %v2070 = vunpack.c.h.b16 %v2026
    %v2071 = vunpack.c.l.b16 %v2027
    %v2072 = vunpack.c.h.b16 %v2027
    %v2073 = vunpack.c.l.b16 %v2028
    %v2074 = vunpack.c.h.b16 %v2028
    %v2075 = vunpack.c.l.b16 %v2029
    %v2076 = vunpack.c.h.b16 %v2029
    %v2077 = vunpack.c.l.b16 %v2030
    %v2078 = vunpack.c.h.b16 %v2030
    %v2079 = vunpack.c.l.b16 %v2031
    %v2080 = vunpack.c.h.b16 %v2031
    %v2081 = vunpack.c.l.b16 %v2032
    %v2082 = vunpack.c.h.b16 %v2032
    %v2083 = vunpack.c.l.b16 %v2033
    %v2084 = vunpack.c.h.b16 %v2033
    %v2085 = vunpack.c.l.b16 %v2034
    %v2086 = vunpack.c.h.b16 %v2034
    %v2087 = vunpack.c.l.b16 %v2035
    %v2088 = vunpack.c.h.b16 %v2035
    %v2089 = vunpack.c.l.b16 %v2036
    %v2090 = vunpack.c.h.b16 %v2036
    %v2091 = vpack.c.b16 %v2061, %v2059
    %v2092 = vpack.c.b16 %v2062, %v2060
    %v2093 = vpack.c.b16 %v2065, %v2063
    %v2094 = vpack.c.b16 %v2066, %v2064
    %v2095 = vpack.c.b16 %v2069, %v2067
    %v2096 = vpack.c.b16 %v2070, %v2068
    %v2097 = vpack.c.b16 %v2073, %v2071
    %v2098 = vpack.c.b16 %v2074, %v2072
    %v2099 = vpack.c.b16 %v2077, %v2075
    %v2100 = vpack.c.b16 %v2078, %v2076
    %v2101 = vpack.c.b16 %v2081, %v2079
    %v2102 = vpack.c.b16 %v2082, %v2080
    %v2103 = vpack.c.b16 %v2085, %v2083
    %v2104 = vpack.c.b16 %v2086, %v2084
    %v2105 = vpack.c.b16 %v2089, %v2087
    %v2106 = vpack.c.b16 %v2090, %v2088
    %2123 = vmatpush.bf16.msra.mxu0 %v2105
    %2124 = vmatpush.bf16.msra.mxu0 %v2103
    %2125 = vmatpush.bf16.msra.mxu0 %v2101
    %2126 = vmatpush.bf16.msra.mxu0 %v2099
    %2127 = vmatpush.bf16.msra.mxu0 %v2097
    %2128 = vmatpush.bf16.msra.mxu0 %v2095
    %2129 = vmatpush.bf16.msra.mxu0 %v2093
    %2130 = vmatpush.bf16.msra.mxu0 %v2091
    %2131 = vmatmul.bf16.gmra.mxu0 %v2020
    %v2132 = vpop.f32.mrf.mxu0
    %v2133 = vadd.f32 %v2039, %v2132
    %v2134 = vpop.f32.mrf.mxu0
    %2135 = vdwg.mxu0
    %2136 = vmatpush.bf16.msra.mxu0 %v2106
    %2137 = vmatpush.bf16.msra.mxu0 %v2104
    %2138 = vmatpush.bf16.msra.mxu0 %v2102
    %2139 = vmatpush.bf16.msra.mxu0 %v2100
    %2140 = vmatpush.bf16.msra.mxu0 %v2098
    %2141 = vmatpush.bf16.msra.mxu0 %v2096
    %2142 = vmatpush.bf16.msra.mxu0 %v2094
    %2143 = vmatpush.bf16.msra.mxu0 %v2092
    %2144 = vmatmul.bf16.gmra.mxu0 %v2020
    %v2145 = vpop.f32.mrf.mxu0
    %v2146 = vadd.f32 %v2040, %v2145
    %v2147 = vpop.f32.mrf.mxu0
    %2148 = vdwg.mxu0
    %v2149 = vpack.c.bf16 %v2133, %v2133
    %v2150 = vpack.c.bf16 %v2146, %v2146
    %v2151 = vld [vmem:[#allocation13] sm:$0xff]
    %v2152 = vld [vmem:[#allocation13 + $0x8] sm:$0xff]
    %v2153 = vld [vmem:[#allocation13 + $0x10] sm:$0xff]
    %v2154 = vld [vmem:[#allocation13 + $0x18] sm:$0xff]
    %v2155 = vld [vmem:[#allocation13 + $0x20] sm:$0xff]
    %v2156 = vld [vmem:[#allocation13 + $0x28] sm:$0xff]
    %v2157 = vld [vmem:[#allocation13 + $0x30] sm:$0xff]
    %v2158 = vld [vmem:[#allocation13 + $0x38] sm:$0xff]
    %v2159 = vld [vmem:[#allocation13 + $0x40] sm:$0xff]
    %v2160 = vld [vmem:[#allocation13 + $0x48] sm:$0xff]
    %v2161 = vld [vmem:[#allocation13 + $0x50] sm:$0xff]
    %v2162 = vld [vmem:[#allocation13 + $0x58] sm:$0xff]
    %v2163 = vld [vmem:[#allocation13 + $0x60] sm:$0xff]
    %v2164 = vld [vmem:[#allocation13 + $0x68] sm:$0xff]
    %v2165 = vld [vmem:[#allocation13 + $0x70] sm:$0xff]
    %v2166 = vld [vmem:[#allocation13 + $0x78] sm:$0xff]
    %v2167 = vld [vmem:[#allocation13 + $0x80] sm:$0xff]
    %v2168 = vld [vmem:[#allocation13 + $0x88] sm:$0xff]
    %v2169 = vld [vmem:[#allocation13 + $0x90] sm:$0xff]
    %v2170 = vld [vmem:[#allocation13 + $0x98] sm:$0xff]
    %v2171 = vld [vmem:[#allocation13 + $0xa0] sm:$0xff]
    %v2172 = vld [vmem:[#allocation13 + $0xa8] sm:$0xff]
    %v2173 = vld [vmem:[#allocation13 + $0xb0] sm:$0xff]
    %v2174 = vld [vmem:[#allocation13 + $0xb8] sm:$0xff]
    %v2175 = vld [vmem:[#allocation13 + $0xc0] sm:$0xff]
    %v2176 = vld [vmem:[#allocation13 + $0xc8] sm:$0xff]
    %v2177 = vld [vmem:[#allocation13 + $0xd0] sm:$0xff]
    %v2178 = vld [vmem:[#allocation13 + $0xd8] sm:$0xff]
    %v2179 = vld [vmem:[#allocation13 + $0xe0] sm:$0xff]
    %v2180 = vld [vmem:[#allocation13 + $0xe8] sm:$0xff]
    %v2181 = vld [vmem:[#allocation13 + $0xf0] sm:$0xff]
    %v2182 = vld [vmem:[#allocation13 + $0xf8] sm:$0xff]
    %v2183 = vld [vmem:[%s9] sm:$0x3]
    %v2185 = vperm.slane %v2183, 0
    %v2186 = vperm.slane %v2183, 1
    %v2221 = vunpack.c.l.b16 %v2151
    %v2222 = vunpack.c.h.b16 %v2151
    %v2223 = vunpack.c.l.b16 %v2152
    %v2224 = vunpack.c.h.b16 %v2152
    %v2225 = vunpack.c.l.b16 %v2153
    %v2226 = vunpack.c.h.b16 %v2153
    %v2227 = vunpack.c.l.b16 %v2154
    %v2228 = vunpack.c.h.b16 %v2154
    %v2229 = vunpack.c.l.b16 %v2155
    %v2230 = vunpack.c.h.b16 %v2155
    %v2231 = vunpack.c.l.b16 %v2156
    %v2232 = vunpack.c.h.b16 %v2156
    %v2233 = vunpack.c.l.b16 %v2157
    %v2234 = vunpack.c.h.b16 %v2157
    %v2235 = vunpack.c.l.b16 %v2158
    %v2236 = vunpack.c.h.b16 %v2158
    %v2237 = vunpack.c.l.b16 %v2159
    %v2238 = vunpack.c.h.b16 %v2159
    %v2239 = vunpack.c.l.b16 %v2160
    %v2240 = vunpack.c.h.b16 %v2160
    %v2241 = vunpack.c.l.b16 %v2161
    %v2242 = vunpack.c.h.b16 %v2161
    %v2243 = vunpack.c.l.b16 %v2162
    %v2244 = vunpack.c.h.b16 %v2162
    %v2245 = vunpack.c.l.b16 %v2163
    %v2246 = vunpack.c.h.b16 %v2163
    %v2247 = vunpack.c.l.b16 %v2164
    %v2248 = vunpack.c.h.b16 %v2164
    %v2249 = vunpack.c.l.b16 %v2165
    %v2250 = vunpack.c.h.b16 %v2165
    %v2251 = vunpack.c.l.b16 %v2166
    %v2252 = vunpack.c.h.b16 %v2166
    %v2253 = vunpack.c.l.b16 %v2167
    %v2254 = vunpack.c.h.b16 %v2167
    %v2255 = vunpack.c.l.b16 %v2168
    %v2256 = vunpack.c.h.b16 %v2168
    %v2257 = vunpack.c.l.b16 %v2169
    %v2258 = vunpack.c.h.b16 %v2169
    %v2259 = vunpack.c.l.b16 %v2170
    %v2260 = vunpack.c.h.b16 %v2170
    %v2261 = vunpack.c.l.b16 %v2171
    %v2262 = vunpack.c.h.b16 %v2171
    %v2263 = vunpack.c.l.b16 %v2172
    %v2264 = vunpack.c.h.b16 %v2172
    %v2265 = vunpack.c.l.b16 %v2173
    %v2266 = vunpack.c.h.b16 %v2173
    %v2267 = vunpack.c.l.b16 %v2174
    %v2268 = vunpack.c.h.b16 %v2174
    %v2269 = vunpack.c.l.b16 %v2175
    %v2270 = vunpack.c.h.b16 %v2175
    %v2271 = vunpack.c.l.b16 %v2176
    %v2272 = vunpack.c.h.b16 %v2176
    %v2273 = vunpack.c.l.b16 %v2177
    %v2274 = vunpack.c.h.b16 %v2177
    %v2275 = vunpack.c.l.b16 %v2178
    %v2276 = vunpack.c.h.b16 %v2178
    %v2277 = vunpack.c.l.b16 %v2179
    %v2278 = vunpack.c.h.b16 %v2179
    %v2279 = vunpack.c.l.b16 %v2180
    %v2280 = vunpack.c.h.b16 %v2180
    %v2281 = vunpack.c.l.b16 %v2181
    %v2282 = vunpack.c.h.b16 %v2181
    %v2283 = vunpack.c.l.b16 %v2182
    %v2284 = vunpack.c.h.b16 %v2182
    %v2285 = vpack.c.b16 %v2223, %v2221
    %v2286 = vpack.c.b16 %v2224, %v2222
    %v2287 = vpack.c.b16 %v2227, %v2225
    %v2288 = vpack.c.b16 %v2228, %v2226
    %v2289 = vpack.c.b16 %v2231, %v2229
    %v2290 = vpack.c.b16 %v2232, %v2230
    %v2291 = vpack.c.b16 %v2235, %v2233
    %v2292 = vpack.c.b16 %v2236, %v2234
    %v2293 = vpack.c.b16 %v2239, %v2237
    %v2294 = vpack.c.b16 %v2240, %v2238
    %v2295 = vpack.c.b16 %v2243, %v2241
    %v2296 = vpack.c.b16 %v2244, %v2242
    %v2297 = vpack.c.b16 %v2247, %v2245
    %v2298 = vpack.c.b16 %v2248, %v2246
    %v2299 = vpack.c.b16 %v2251, %v2249
    %v2300 = vpack.c.b16 %v2252, %v2250
    %v2301 = vpack.c.b16 %v2255, %v2253
    %v2302 = vpack.c.b16 %v2256, %v2254
    %v2303 = vpack.c.b16 %v2259, %v2257
    %v2304 = vpack.c.b16 %v2260, %v2258
    %v2305 = vpack.c.b16 %v2263, %v2261
    %v2306 = vpack.c.b16 %v2264, %v2262
    %v2307 = vpack.c.b16 %v2267, %v2265
    %v2308 = vpack.c.b16 %v2268, %v2266
    %v2309 = vpack.c.b16 %v2271, %v2269
    %v2310 = vpack.c.b16 %v2272, %v2270
    %v2311 = vpack.c.b16 %v2275, %v2273
    %v2312 = vpack.c.b16 %v2276, %v2274
    %v2313 = vpack.c.b16 %v2279, %v2277
    %v2314 = vpack.c.b16 %v2280, %v2278
    %v2315 = vpack.c.b16 %v2283, %v2281
    %v2316 = vpack.c.b16 %v2284, %v2282
    %2349 = vmatpush.bf16.msra.mxu0 %v2299
    %2350 = vmatpush.bf16.msra.mxu0 %v2297
    %2351 = vmatpush.bf16.msra.mxu0 %v2295
    %2352 = vmatpush.bf16.msra.mxu0 %v2293
    %2353 = vmatpush.bf16.msra.mxu0 %v2291
    %2354 = vmatpush.bf16.msra.mxu0 %v2289
    %2355 = vmatpush.bf16.msra.mxu0 %v2287
    %2356 = vmatpush.bf16.msra.mxu0 %v2285
    %2357 = vmatmul.bf16.gmra.mxu0 %v2149
    %v2358 = vpop.f32.mrf.mxu0
    %v2359 = vadd.f32 %v2185, %v2358
    %v2360 = vpop.f32.mrf.mxu0
    %2361 = vdwg.mxu0
    %2362 = vmatpush.bf16.msra.mxu0 %v2315
    %2363 = vmatpush.bf16.msra.mxu0 %v2313
    %2364 = vmatpush.bf16.msra.mxu0 %v2311
    %2365 = vmatpush.bf16.msra.mxu0 %v2309
    %2366 = vmatpush.bf16.msra.mxu0 %v2307
    %2367 = vmatpush.bf16.msra.mxu0 %v2305
    %2368 = vmatpush.bf16.msra.mxu0 %v2303
    %2369 = vmatpush.bf16.msra.mxu0 %v2301
    %2370 = vmatmul.bf16.gmra.mxu0 %v2150
    %v2371 = vpop.f32.mrf.mxu0
    %v2372 = vadd.f32 %v2359, %v2371
    %v2373 = vpop.f32.mrf.mxu0
    %2374 = vdwg.mxu0
    %2375 = vmatpush.bf16.msra.mxu0 %v2300
    %2376 = vmatpush.bf16.msra.mxu0 %v2298
    %2377 = vmatpush.bf16.msra.mxu0 %v2296
    %2378 = vmatpush.bf16.msra.mxu0 %v2294
    %2379 = vmatpush.bf16.msra.mxu0 %v2292
    %2380 = vmatpush.bf16.msra.mxu0 %v2290
    %2381 = vmatpush.bf16.msra.mxu0 %v2288
    %2382 = vmatpush.bf16.msra.mxu0 %v2286
    %2383 = vmatmul.bf16.gmra.mxu0 %v2149
    %v2384 = vpop.f32.mrf.mxu0
    %v2385 = vadd.f32 %v2186, %v2384
    %v2386 = vpop.f32.mrf.mxu0
    %2387 = vdwg.mxu0
    %2388 = vmatpush.bf16.msra.mxu0 %v2316
    %2389 = vmatpush.bf16.msra.mxu0 %v2314
    %2390 = vmatpush.bf16.msra.mxu0 %v2312
    %2391 = vmatpush.bf16.msra.mxu0 %v2310
    %2392 = vmatpush.bf16.msra.mxu0 %v2308
    %2393 = vmatpush.bf16.msra.mxu0 %v2306
    %2394 = vmatpush.bf16.msra.mxu0 %v2304
    %2395 = vmatpush.bf16.msra.mxu0 %v2302
    %2396 = vmatmul.bf16.gmra.mxu0 %v2150
    %v2397 = vpop.f32.mrf.mxu0
    %v2398 = vadd.f32 %v2385, %v2397
    %v2399 = vpop.f32.mrf.mxu0
    %2400 = vdwg.mxu0
    %v2401 = vmax.f32 %v2372, 0.0
    %v2402 = vmax.f32 %v2398, 0.0
    %v2403 = vpack.c.bf16 %v2401, %v2401
    %v2404 = vpack.c.bf16 %v2402, %v2402
    %v2405 = vld [vmem:[#allocation14] sm:$0xf]
    %v2406 = vld [vmem:[#allocation14 + $0x4] sm:$0xf]
    %v2407 = vld [vmem:[#allocation14 + $0x8] sm:$0xf]
    %v2408 = vld [vmem:[#allocation14 + $0xc] sm:$0xf]
    %v2409 = vld [vmem:[#allocation14 + $0x10] sm:$0xf]
    %v2410 = vld [vmem:[#allocation14 + $0x14] sm:$0xf]
    %v2411 = vld [vmem:[#allocation14 + $0x18] sm:$0xf]
    %v2412 = vld [vmem:[#allocation14 + $0x1c] sm:$0xf]
    %v2413 = vld [vmem:[#allocation14 + $0x20] sm:$0xf]
    %v2414 = vld [vmem:[#allocation14 + $0x24] sm:$0xf]
    %v2415 = vld [vmem:[#allocation14 + $0x28] sm:$0xf]
    %v2416 = vld [vmem:[#allocation14 + $0x2c] sm:$0xf]
    %v2417 = vld [vmem:[#allocation14 + $0x30] sm:$0xf]
    %v2418 = vld [vmem:[#allocation14 + $0x34] sm:$0xf]
    %v2419 = vld [vmem:[#allocation14 + $0x38] sm:$0xf]
    %v2420 = vld [vmem:[#allocation14 + $0x3c] sm:$0xf]
    %v2421 = vld [vmem:[#allocation14 + $0x40] sm:$0xf]
    %v2422 = vld [vmem:[#allocation14 + $0x44] sm:$0xf]
    %v2423 = vld [vmem:[#allocation14 + $0x48] sm:$0xf]
    %v2424 = vld [vmem:[#allocation14 + $0x4c] sm:$0xf]
    %v2425 = vld [vmem:[#allocation14 + $0x50] sm:$0xf]
    %v2426 = vld [vmem:[#allocation14 + $0x54] sm:$0xf]
    %v2427 = vld [vmem:[#allocation14 + $0x58] sm:$0xf]
    %v2428 = vld [vmem:[#allocation14 + $0x5c] sm:$0xf]
    %v2429 = vld [vmem:[#allocation14 + $0x60] sm:$0xf]
    %v2430 = vld [vmem:[#allocation14 + $0x64] sm:$0xf]
    %v2431 = vld [vmem:[#allocation14 + $0x68] sm:$0xf]
    %v2432 = vld [vmem:[#allocation14 + $0x6c] sm:$0xf]
    %v2433 = vld [vmem:[#allocation14 + $0x70] sm:$0xf]
    %v2434 = vld [vmem:[#allocation14 + $0x74] sm:$0xf]
    %v2435 = vld [vmem:[#allocation14 + $0x78] sm:$0xf]
    %v2436 = vld [vmem:[#allocation14 + $0x7c] sm:$0xf]
    %v2437 = vld [vmem:[%s11] sm:$0x1]
    %v2439 = vperm.slane %v2437, 0
    %v2473 = vunpack.c.l.b16 %v2405
    %v2474 = vunpack.c.l.b16 %v2406
    %v2475 = vunpack.c.l.b16 %v2407
    %v2476 = vunpack.c.l.b16 %v2408
    %v2477 = vunpack.c.l.b16 %v2409
    %v2478 = vunpack.c.l.b16 %v2410
    %v2479 = vunpack.c.l.b16 %v2411
    %v2480 = vunpack.c.l.b16 %v2412
    %v2481 = vunpack.c.l.b16 %v2413
    %v2482 = vunpack.c.l.b16 %v2414
    %v2483 = vunpack.c.l.b16 %v2415
    %v2484 = vunpack.c.l.b16 %v2416
    %v2485 = vunpack.c.l.b16 %v2417
    %v2486 = vunpack.c.l.b16 %v2418
    %v2487 = vunpack.c.l.b16 %v2419
    %v2488 = vunpack.c.l.b16 %v2420
    %v2489 = vunpack.c.l.b16 %v2421
    %v2490 = vunpack.c.l.b16 %v2422
    %v2491 = vunpack.c.l.b16 %v2423
    %v2492 = vunpack.c.l.b16 %v2424
    %v2493 = vunpack.c.l.b16 %v2425
    %v2494 = vunpack.c.l.b16 %v2426
    %v2495 = vunpack.c.l.b16 %v2427
    %v2496 = vunpack.c.l.b16 %v2428
    %v2497 = vunpack.c.l.b16 %v2429
    %v2498 = vunpack.c.l.b16 %v2430
    %v2499 = vunpack.c.l.b16 %v2431
    %v2500 = vunpack.c.l.b16 %v2432
    %v2501 = vunpack.c.l.b16 %v2433
    %v2502 = vunpack.c.l.b16 %v2434
    %v2503 = vunpack.c.l.b16 %v2435
    %v2504 = vunpack.c.l.b16 %v2436
    %v2505 = vpack.c.b16 %v2474, %v2473
    %v2506 = vpack.c.b16 %v2476, %v2475
    %v2507 = vpack.c.b16 %v2478, %v2477
    %v2508 = vpack.c.b16 %v2480, %v2479
    %v2509 = vpack.c.b16 %v2482, %v2481
    %v2510 = vpack.c.b16 %v2484, %v2483
    %v2511 = vpack.c.b16 %v2486, %v2485
    %v2512 = vpack.c.b16 %v2488, %v2487
    %v2513 = vpack.c.b16 %v2490, %v2489
    %v2514 = vpack.c.b16 %v2492, %v2491
    %v2515 = vpack.c.b16 %v2494, %v2493
    %v2516 = vpack.c.b16 %v2496, %v2495
    %v2517 = vpack.c.b16 %v2498, %v2497
    %v2518 = vpack.c.b16 %v2500, %v2499
    %v2519 = vpack.c.b16 %v2502, %v2501
    %v2520 = vpack.c.b16 %v2504, %v2503
    %2537 = vmatpush.bf16.msra.mxu0 %v2512
    %2538 = vmatpush.bf16.msra.mxu0 %v2511
    %2539 = vmatpush.bf16.msra.mxu0 %v2510
    %2540 = vmatpush.bf16.msra.mxu0 %v2509
    %2541 = vmatpush.bf16.msra.mxu0 %v2508
    %2542 = vmatpush.bf16.msra.mxu0 %v2507
    %2543 = vmatpush.bf16.msra.mxu0 %v2506
    %2544 = vmatpush.bf16.msra.mxu0 %v2505
    %2545 = vmatmul.bf16.gmra.mxu0 %v2403
    %v2546 = vpop.f32.mrf.mxu0
    %v2547 = vadd.f32 %v2439, %v2546
    %v2548 = vpop.f32.mrf.mxu0
    %2549 = vdwg.mxu0
    %2550 = vmatpush.bf16.msra.mxu0 %v2520
    %2551 = vmatpush.bf16.msra.mxu0 %v2519
    %2552 = vmatpush.bf16.msra.mxu0 %v2518
    %2553 = vmatpush.bf16.msra.mxu0 %v2517
    %2554 = vmatpush.bf16.msra.mxu0 %v2516
    %2555 = vmatpush.bf16.msra.mxu0 %v2515
    %2556 = vmatpush.bf16.msra.mxu0 %v2514
    %2557 = vmatpush.bf16.msra.mxu0 %v2513
    %2558 = vmatmul.bf16.gmra.mxu0 %v2404
    %v2559 = vpop.f32.mrf.mxu0
    %v2560 = vadd.f32 %v2547, %v2559
    %v2561 = vpop.f32.mrf.mxu0
    %2562 = vdwg.mxu0
    %2563 = vst [vmem:[#allocation16] sm:$0xff] %v2133
    %2564 = vst [vmem:[#allocation16 + $0x8] sm:$0xff] %v2146
    %2565 = vst [vmem:[#allocation17] sm:$0xff] %v2560
    // Predicated region
    $region82: #{tpu_custom_call.1} parent=1 // pred_check
      _
    $region83: #{tpu_custom_call.1} parent=1 // pred_check_branch
      %2567 = sbr.rel (0) target = $region85
    $region84: #{tpu_custom_call.1} parent=1 // pred_region
      %2569 = vsyncadd [#allocation4], 0
      %s2571 = sshll.u32 [#allocation16], 4
      %s2572 = int_to_ptr.vmem [resolvable:$true] %s2571
      %s2573 = sshll.u32 %s12, 4
      %s2574 = int_to_ptr.hbm [resolvable:$true] %s2573
      %2576 = dma.vmem_to_hbm [thread:$0]  %s2572, 256, %s2574, [#allocation4]
    $region85: #{tpu_custom_call.1} parent=1 // pred_fallthru
      _
    // Predicated region
    $region86: #{tpu_custom_call.1} parent=1 // pred_check
      _
    $region87: #{tpu_custom_call.1} parent=1 // pred_check_branch
      %2578 = sbr.rel (0) target = $region89
    $region88: #{tpu_custom_call.1} parent=1 // pred_region
      %2580 = vsyncadd [#allocation18], 0
      %s2582 = sshll.u32 [#allocation17], 4
      %s2583 = int_to_ptr.vmem [resolvable:$true] %s2582
      %s2584 = sshll.u32 %s13, 4
      %s2585 = int_to_ptr.hbm [resolvable:$true] %s2584
      %2587 = dma.vmem_to_hbm [thread:$0]  %s2583, 128, %s2585, [#allocation18]
    $region89: #{tpu_custom_call.1} parent=1 // pred_fallthru
      _
    // Predicated region
    $region90: #{tpu_custom_call.1} parent=1 // pred_check
      _
    $region91: #{tpu_custom_call.1} parent=1 // pred_check_branch
      %2589 = sbr.rel (0) target = $region93
    $region92: #{tpu_custom_call.1} parent=1 // pred_region
      %2591 = dma.done [#allocation4], 256
    $region93: #{tpu_custom_call.1} parent=1 // pred_fallthru
      _
    // Predicated region
    $region94: #{tpu_custom_call.1} parent=1 // pred_check
      _
    $region95: #{tpu_custom_call.1} parent=1 // pred_check_branch
      %2593 = sbr.rel (0) target = $region97
    $region96: #{tpu_custom_call.1} parent=1 // pred_region
      %2595 = dma.done [#allocation18], 128
    $region97: #{tpu_custom_call.1} parent=1 // pred_fallthru
      _
    %2596 = vsyncpa [#allocation3], 1
    %2597 = vsyncpa [#allocation6], 1
    %2598 = vsyncpa [#allocation9], 1
    %2599 = vsyncpa [#allocation12], 1
    %2600 = vsyncpa [#allocation15], 1
    %2601 = vsyncpa [#allocation4], 1
    %2602 = vsyncpa [#allocation18], 1

</llo_original>
